<compile_context>
chip_gen: v7x
topology: tpu7x:2x2x1
jax: 0.10.0
libtpu: 0.0.40
codegen_flags: <defaults>
</compile_context>

<pallas_src>
import jax
import jax.numpy as jnp
from jax import lax
from jax.experimental import pallas as pl
from jax.experimental.pallas import tpu as pltpu


_LANE = 128        # lane width   -> per-gate hidden padding
_SUBLANE = 8       # sublane width -> batch padding
_UNROLL_LIMIT = 32 # fully unroll the recurrence up to this many timesteps


def _round_up(x, m):
    return ((x + m - 1) // m) * m


def _future_control_gru_kernel(x_ref, wih_ref, whh_ref, bih_ref, bhh_ref,
                               wfc_ref, bfc_ref, out_ref, gi_ref):
    # x_ref   : (S*Bp, I)     time-major, batch padded to Bp (multiple of 8)
    # wih_ref : (I, 3*Hp)     gate-padded input->hidden weights, [r|z|n] slabs
    # whh_ref : (Hp, 3*Hp)    gate-padded hidden->hidden weights
    # bih_ref : (1, 3*Hp), bhh_ref : (1, 3*Hp)
    # wfc_ref : (Hp, O), bfc_ref : (1, O)
    # out_ref : (Bp, O)
    # gi_ref  : (S*Bp, 3*Hp)  VMEM scratch holding the hoisted input projection
    SB = x_ref.shape[0]
    Bp, _ = out_ref.shape
    Hp3 = whh_ref.shape[1]
    Hp = Hp3 // 3
    S = SB // Bp

    # ---- Phase 1: hoisted input projection — one big MXU matmul for all t ----
    gi_ref[...] = (
        jnp.dot(x_ref[...], wih_ref[...], preferred_element_type=jnp.float32)
        + bih_ref[...])

    # ---- Phase 2: recurrence. Hoist weight/bias loads out of the loop. ----
    whh = whh_ref[...]
    bhh = jnp.broadcast_to(bhh_ref[...], (Bp, Hp3))

    def step(t, h):
        start = t * Bp
        if not isinstance(start, int):
            start = pl.multiple_of(start, Bp)
        gi_t = gi_ref[pl.ds(start, Bp), :]                         # (Bp, 3*Hp)
        gh = jnp.dot(h, whh, preferred_element_type=jnp.float32) + bhh
        # Lane-aligned gate slabs: each slab starts on a 128-lane boundary,
        # so these slices are free views (no cross-lane extraction).
        r = jax.nn.sigmoid(gi_t[:, 0:Hp] + gh[:, 0:Hp])
        z = jax.nn.sigmoid(gi_t[:, Hp:2 * Hp] + gh[:, Hp:2 * Hp])
        n = jnp.tanh(gi_t[:, 2 * Hp:3 * Hp] + r * gh[:, 2 * Hp:3 * Hp])
        return (1.0 - z) * n + z * h

    h = jnp.zeros((Bp, Hp), jnp.float32)
    if S <= _UNROLL_LIMIT:
        # Full unroll of the short static-length recurrence (LLO visibility).
        for t in range(S):
            h = step(t, h)
    else:
        h = lax.fori_loop(0, S, step, h)

    # ---- Final Linear on the last hidden state (== gru_output[:, -1]). ----
    out_ref[...] = (
        jnp.dot(h, wfc_ref[...], preferred_element_type=jnp.float32)
        + bfc_ref[...])


def _pack_gates_cols(w, H, Hp):
    """(rows, 3H) with gates [r|z|n] -> (rows, 3*Hp), each gate slab lane-aligned."""
    rows = w.shape[0]
    out = jnp.zeros((rows, 3 * Hp), jnp.float32)
    for g in range(3):
        out = out.at[:, g * Hp:g * Hp + H].set(w[:, g * H:(g + 1) * H])
    return out


def future_control_gru(x, params):
    """x: [batch, seq, input_dim] (PyTorch batch_first). Returns [batch, output_dim]."""
    B, S, I = x.shape
    H = params["w_hh"].shape[1]
    O = params["w_fc"].shape[0]
    Hp = _round_up(max(H, _LANE), _LANE)        # lane-aligned per-gate width
    Bp = _round_up(max(B, _SUBLANE), _SUBLANE)  # sublane-aligned batch

    # Time-major + batch pad. This relayout touches only B*S*I elements; the
    # much larger hoisted projection gi is produced time-major for free inside
    # the kernel, so no transpose of gi is ever needed.
    x_tm = jnp.transpose(x, (1, 0, 2)).astype(jnp.float32)
    if Bp != B:
        x_tm = jnp.pad(x_tm, ((0, 0), (0, Bp - B), (0, 0)))
    x2d = x_tm.reshape(S * Bp, I)

    # Pre-transpose weights to (in, out) and pad each gate slab to Hp lanes.
    # Padded rows/cols are zero, so padded lanes contribute exact zeros.
    wih_p = _pack_gates_cols(jnp.transpose(params["w_ih"]).astype(jnp.float32), H, Hp)
    whh_t = _pack_gates_cols(jnp.transpose(params["w_hh"]).astype(jnp.float32), H, Hp)
    whh_p = jnp.zeros((Hp, 3 * Hp), jnp.float32).at[:H, :].set(whh_t)
    bih_p = _pack_gates_cols(params["b_ih"].reshape(1, 3 * H).astype(jnp.float32), H, Hp)
    bhh_p = _pack_gates_cols(params["b_hh"].reshape(1, 3 * H).astype(jnp.float32), H, Hp)
    wfc_p = jnp.zeros((Hp, O), jnp.float32).at[:H, :].set(
        jnp.transpose(params["w_fc"]).astype(jnp.float32))
    bfc = params["b_fc"].reshape(1, O).astype(jnp.float32)

    flops = (2 * S * Bp * I * 3 * Hp          # hoisted input projection
             + 2 * S * Bp * Hp * 3 * Hp       # recurrent matmuls
             + 2 * Bp * Hp * O)               # fc head
    transcendentals = 3 * S * Bp * Hp
    bytes_accessed = 4 * (S * Bp * I + I * 3 * Hp + Hp * 3 * Hp
                          + 2 * 3 * Hp + Hp * O + O + Bp * O)

    vmem = pl.BlockSpec(memory_space=pltpu.MemorySpace.VMEM)
    out = pl.pallas_call(
        _future_control_gru_kernel,
        out_shape=jax.ShapeDtypeStruct((Bp, O), jnp.float32),
        in_specs=[vmem] * 7,
        out_specs=vmem,
        scratch_shapes=[pltpu.VMEM((S * Bp, 3 * Hp), jnp.float32)],
        cost_estimate=pl.CostEstimate(flops=flops,
                                      transcendentals=transcendentals,
                                      bytes_accessed=bytes_accessed),
    )(x2d, wih_p, whh_p, bih_p, bhh_p, wfc_p, bfc)
    return out[:B]


def _reference(x, params):
    """Pure-JAX reference replicating torch.nn.GRU + Linear semantics."""
    H = params["w_hh"].shape[1]
    w_ih, w_hh = params["w_ih"], params["w_hh"]
    b_ih, b_hh = params["b_ih"], params["b_hh"]

    def cell(h, x_t):
        gi = x_t @ w_ih.T + b_ih
        gh = h @ w_hh.T + b_hh
        r = jax.nn.sigmoid(gi[:, :H] + gh[:, :H])
        z = jax.nn.sigmoid(gi[:, H:2 * H] + gh[:, H:2 * H])
        n = jnp.tanh(gi[:, 2 * H:] + r * gh[:, 2 * H:])
        return (1.0 - z) * n + z * h, None

    h0 = jnp.zeros((x.shape[0], H), jnp.float32)
    h_last, _ = lax.scan(cell, h0, jnp.transpose(x, (1, 0, 2)))
    return h_last @ params["w_fc"].T + params["b_fc"]


if __name__ == "__main__":
    B, S, I, H, O = 2, 8, 16, 32, 3   # batch, seq, input_dim, hidden_dim, output_dim

    key = jax.random.PRNGKey(0)
    k_wih, k_whh, k_bih, k_bhh, k_wfc, k_bfc, k_x = jax.random.split(key, 7)
    bound = 1.0 / float(jnp.sqrt(jnp.float32(H)))
    params = {
        "w_ih": jax.random.uniform(k_wih, (3 * H, I), jnp.float32, -bound, bound),
        "w_hh": jax.random.uniform(k_whh, (3 * H, H), jnp.float32, -bound, bound),
        "b_ih": jax.random.uniform(k_bih, (3 * H,), jnp.float32, -bound, bound),
        "b_hh": jax.random.uniform(k_bhh, (3 * H,), jnp.float32, -bound, bound),
        "w_fc": jax.random.uniform(k_wfc, (O, H), jnp.float32, -bound, bound),
        "b_fc": jax.random.uniform(k_bfc, (O,), jnp.float32, -bound, bound),
    }
    x = jax.random.normal(k_x, (B, S, I), jnp.float32)

    y = future_control_gru(x, params)
    jax.block_until_ready(y)

    y_ref = _reference(x, params)
    assert y.shape == (B, O), y.shape
    assert jnp.allclose(y, y_ref, atol=1e-4, rtol=1e-4), (y, y_ref)

    print("KERNEL_OK")
</pallas_src>

<mosaic_0001>
module attributes {stable_mosaic.version = 11 : i64} {
  func.func @_future_control_gru_kernel(%arg0: memref<64x16xf32, #tpu.memory_space<vmem>>, %arg1: memref<16x384xf32, #tpu.memory_space<vmem>>, %arg2: memref<128x384xf32, #tpu.memory_space<vmem>>, %arg3: memref<1x384xf32, #tpu.memory_space<vmem>>, %arg4: memref<1x384xf32, #tpu.memory_space<vmem>>, %arg5: memref<128x3xf32, #tpu.memory_space<vmem>>, %arg6: memref<1x3xf32, #tpu.memory_space<vmem>>, %arg7: memref<8x3xf32, #tpu.memory_space<vmem>>, %arg8: memref<64x384xf32, #tpu.memory_space<vmem>>) attributes {dimension_semantics = [], scalar_prefetch = 0 : i64, scratch_operands = 1 : i64, tpu.core_type = #tpu.core_type<tc>} {
    %c0 = arith.constant 0 : index
    %c0_0 = arith.constant 0 : index
    %0 = vector.load %arg0[%c0, %c0_0] : memref<64x16xf32, #tpu.memory_space<vmem>>, vector<64x16xf32>
    %c0_1 = arith.constant 0 : index
    %c0_2 = arith.constant 0 : index
    %1 = vector.load %arg1[%c0_1, %c0_2] : memref<16x384xf32, #tpu.memory_space<vmem>>, vector<16x384xf32>
    %cst = arith.constant dense<0.000000e+00> : vector<64x384xf32>
    %2 = tpu.matmul %0, %1, %cst {dimension_numbers = #tpu.dot_dimension_numbers<[1], [0], [0], [1], [0, 0, 1, 1], [], []>} : vector<64x16xf32>, vector<16x384xf32>, vector<64x384xf32> -> vector<64x384xf32>
    %c0_3 = arith.constant 0 : index
    %c0_4 = arith.constant 0 : index
    %3 = vector.load %arg3[%c0_3, %c0_4] : memref<1x384xf32, #tpu.memory_space<vmem>>, vector<1x384xf32>
    %4 = vector.broadcast %3 : vector<1x384xf32> to vector<64x384xf32>
    %5 = arith.addf %2, %4 : vector<64x384xf32>
    %c0_5 = arith.constant 0 : index
    %c0_6 = arith.constant 0 : index
    %6 = vector.load %arg8[%c0_5, %c0_6] : memref<64x384xf32, #tpu.memory_space<vmem>>, vector<64x384xf32>
    tpu.vector_store %arg8[%c0_5, %c0_6], %5 {strides = array<i32>} : memref<64x384xf32, #tpu.memory_space<vmem>>, vector<64x384xf32>,
    %c0_7 = arith.constant 0 : index
    %c0_8 = arith.constant 0 : index
    %7 = vector.load %arg2[%c0_7, %c0_8] : memref<128x384xf32, #tpu.memory_space<vmem>>, vector<128x384xf32>
    %c0_9 = arith.constant 0 : index
    %c0_10 = arith.constant 0 : index
    %8 = vector.load %arg4[%c0_9, %c0_10] : memref<1x384xf32, #tpu.memory_space<vmem>>, vector<1x384xf32>
    %9 = vector.shape_cast %8 : vector<1x384xf32> to vector<1x384xf32>
    %10 = vector.broadcast %9 : vector<1x384xf32> to vector<8x384xf32>
    %cst_11 = arith.constant 0.000000e+00 : f32
    %11 = vector.broadcast %cst_11 : f32 to vector<8x128xf32>
    %c0_12 = arith.constant 0 : index
    %c0_13 = arith.constant 0 : index
    %12 = vector.load %arg8[%c0_12, %c0_13] : memref<64x384xf32, #tpu.memory_space<vmem>>, vector<8x384xf32>
    %cst_14 = arith.constant dense<0.000000e+00> : vector<8x384xf32>
    %13 = tpu.matmul %11, %7, %cst_14 {dimension_numbers = #tpu.dot_dimension_numbers<[1], [0], [0], [1], [0, 0, 1, 1], [], []>} : vector<8x128xf32>, vector<128x384xf32>, vector<8x384xf32> -> vector<8x384xf32>
    %14 = arith.addf %13, %10 : vector<8x384xf32>
    %15 = vector.extract_strided_slice %12 {offsets = [0, 0], sizes = [8, 128], strides = [1, 1]} : vector<8x384xf32> to vector<8x128xf32>
    %16 = vector.extract_strided_slice %14 {offsets = [0, 0], sizes = [8, 128], strides = [1, 1]} : vector<8x384xf32> to vector<8x128xf32>
    %17 = arith.addf %15, %16 : vector<8x128xf32>
    %18 = arith.negf %17 : vector<8x128xf32>
    %19 = math.exp %18 : vector<8x128xf32>
    %cst_15 = arith.constant 1.000000e+00 : f32
    %20 = vector.broadcast %cst_15 : f32 to vector<8x128xf32>
    %21 = arith.addf %20, %19 : vector<8x128xf32>
    %22 = arith.divf %20, %21 : vector<8x128xf32>
    %23 = vector.extract_strided_slice %12 {offsets = [0, 128], sizes = [8, 128], strides = [1, 1]} : vector<8x384xf32> to vector<8x128xf32>
    %24 = vector.extract_strided_slice %14 {offsets = [0, 128], sizes = [8, 128], strides = [1, 1]} : vector<8x384xf32> to vector<8x128xf32>
    %25 = arith.addf %23, %24 : vector<8x128xf32>
    %26 = arith.negf %25 : vector<8x128xf32>
    %27 = math.exp %26 : vector<8x128xf32>
    %cst_16 = arith.constant 1.000000e+00 : f32
    %28 = vector.broadcast %cst_16 : f32 to vector<8x128xf32>
    %29 = arith.addf %28, %27 : vector<8x128xf32>
    %30 = arith.divf %28, %29 : vector<8x128xf32>
    %31 = vector.extract_strided_slice %12 {offsets = [0, 256], sizes = [8, 128], strides = [1, 1]} : vector<8x384xf32> to vector<8x128xf32>
    %32 = vector.extract_strided_slice %14 {offsets = [0, 256], sizes = [8, 128], strides = [1, 1]} : vector<8x384xf32> to vector<8x128xf32>
    %33 = arith.mulf %22, %32 : vector<8x128xf32>
    %34 = arith.addf %31, %33 : vector<8x128xf32>
    %35 = math.tanh %34 : vector<8x128xf32>
    %cst_17 = arith.constant 1.000000e+00 : f32
    %36 = vector.broadcast %cst_17 : f32 to vector<8x128xf32>
    %37 = arith.subf %36, %30 : vector<8x128xf32>
    %38 = arith.mulf %37, %35 : vector<8x128xf32>
    %39 = arith.mulf %30, %11 : vector<8x128xf32>
    %40 = arith.addf %38, %39 : vector<8x128xf32>
    %c8 = arith.constant 8 : index
    %c0_18 = arith.constant 0 : index
    %41 = vector.load %arg8[%c8, %c0_18] : memref<64x384xf32, #tpu.memory_space<vmem>>, vector<8x384xf32>
    %cst_19 = arith.constant dense<0.000000e+00> : vector<8x384xf32>
    %42 = tpu.matmul %40, %7, %cst_19 {dimension_numbers = #tpu.dot_dimension_numbers<[1], [0], [0], [1], [0, 0, 1, 1], [], []>} : vector<8x128xf32>, vector<128x384xf32>, vector<8x384xf32> -> vector<8x384xf32>
    %43 = arith.addf %42, %10 : vector<8x384xf32>
    %44 = vector.extract_strided_slice %41 {offsets = [0, 0], sizes = [8, 128], strides = [1, 1]} : vector<8x384xf32> to vector<8x128xf32>
    %45 = vector.extract_strided_slice %43 {offsets = [0, 0], sizes = [8, 128], strides = [1, 1]} : vector<8x384xf32> to vector<8x128xf32>
    %46 = arith.addf %44, %45 : vector<8x128xf32>
    %47 = arith.negf %46 : vector<8x128xf32>
    %48 = math.exp %47 : vector<8x128xf32>
    %cst_20 = arith.constant 1.000000e+00 : f32
    %49 = vector.broadcast %cst_20 : f32 to vector<8x128xf32>
    %50 = arith.addf %49, %48 : vector<8x128xf32>
    %51 = arith.divf %49, %50 : vector<8x128xf32>
    %52 = vector.extract_strided_slice %41 {offsets = [0, 128], sizes = [8, 128], strides = [1, 1]} : vector<8x384xf32> to vector<8x128xf32>
    %53 = vector.extract_strided_slice %43 {offsets = [0, 128], sizes = [8, 128], strides = [1, 1]} : vector<8x384xf32> to vector<8x128xf32>
    %54 = arith.addf %52, %53 : vector<8x128xf32>
    %55 = arith.negf %54 : vector<8x128xf32>
    %56 = math.exp %55 : vector<8x128xf32>
    %cst_21 = arith.constant 1.000000e+00 : f32
    %57 = vector.broadcast %cst_21 : f32 to vector<8x128xf32>
    %58 = arith.addf %57, %56 : vector<8x128xf32>
    %59 = arith.divf %57, %58 : vector<8x128xf32>
    %60 = vector.extract_strided_slice %41 {offsets = [0, 256], sizes = [8, 128], strides = [1, 1]} : vector<8x384xf32> to vector<8x128xf32>
    %61 = vector.extract_strided_slice %43 {offsets = [0, 256], sizes = [8, 128], strides = [1, 1]} : vector<8x384xf32> to vector<8x128xf32>
    %62 = arith.mulf %51, %61 : vector<8x128xf32>
    %63 = arith.addf %60, %62 : vector<8x128xf32>
    %64 = math.tanh %63 : vector<8x128xf32>
    %cst_22 = arith.constant 1.000000e+00 : f32
    %65 = vector.broadcast %cst_22 : f32 to vector<8x128xf32>
    %66 = arith.subf %65, %59 : vector<8x128xf32>
    %67 = arith.mulf %66, %64 : vector<8x128xf32>
    %68 = arith.mulf %59, %40 : vector<8x128xf32>
    %69 = arith.addf %67, %68 : vector<8x128xf32>
    %c16 = arith.constant 16 : index
    %c0_23 = arith.constant 0 : index
    %70 = vector.load %arg8[%c16, %c0_23] : memref<64x384xf32, #tpu.memory_space<vmem>>, vector<8x384xf32>
    %cst_24 = arith.constant dense<0.000000e+00> : vector<8x384xf32>
    %71 = tpu.matmul %69, %7, %cst_24 {dimension_numbers = #tpu.dot_dimension_numbers<[1], [0], [0], [1], [0, 0, 1, 1], [], []>} : vector<8x128xf32>, vector<128x384xf32>, vector<8x384xf32> -> vector<8x384xf32>
    %72 = arith.addf %71, %10 : vector<8x384xf32>
    %73 = vector.extract_strided_slice %70 {offsets = [0, 0], sizes = [8, 128], strides = [1, 1]} : vector<8x384xf32> to vector<8x128xf32>
    %74 = vector.extract_strided_slice %72 {offsets = [0, 0], sizes = [8, 128], strides = [1, 1]} : vector<8x384xf32> to vector<8x128xf32>
    %75 = arith.addf %73, %74 : vector<8x128xf32>
    %76 = arith.negf %75 : vector<8x128xf32>
    %77 = math.exp %76 : vector<8x128xf32>
    %cst_25 = arith.constant 1.000000e+00 : f32
    %78 = vector.broadcast %cst_25 : f32 to vector<8x128xf32>
    %79 = arith.addf %78, %77 : vector<8x128xf32>
    %80 = arith.divf %78, %79 : vector<8x128xf32>
    %81 = vector.extract_strided_slice %70 {offsets = [0, 128], sizes = [8, 128], strides = [1, 1]} : vector<8x384xf32> to vector<8x128xf32>
    %82 = vector.extract_strided_slice %72 {offsets = [0, 128], sizes = [8, 128], strides = [1, 1]} : vector<8x384xf32> to vector<8x128xf32>
    %83 = arith.addf %81, %82 : vector<8x128xf32>
    %84 = arith.negf %83 : vector<8x128xf32>
    %85 = math.exp %84 : vector<8x128xf32>
    %cst_26 = arith.constant 1.000000e+00 : f32
    %86 = vector.broadcast %cst_26 : f32 to vector<8x128xf32>
    %87 = arith.addf %86, %85 : vector<8x128xf32>
    %88 = arith.divf %86, %87 : vector<8x128xf32>
    %89 = vector.extract_strided_slice %70 {offsets = [0, 256], sizes = [8, 128], strides = [1, 1]} : vector<8x384xf32> to vector<8x128xf32>
    %90 = vector.extract_strided_slice %72 {offsets = [0, 256], sizes = [8, 128], strides = [1, 1]} : vector<8x384xf32> to vector<8x128xf32>
    %91 = arith.mulf %80, %90 : vector<8x128xf32>
    %92 = arith.addf %89, %91 : vector<8x128xf32>
    %93 = math.tanh %92 : vector<8x128xf32>
    %cst_27 = arith.constant 1.000000e+00 : f32
    %94 = vector.broadcast %cst_27 : f32 to vector<8x128xf32>
    %95 = arith.subf %94, %88 : vector<8x128xf32>
    %96 = arith.mulf %95, %93 : vector<8x128xf32>
    %97 = arith.mulf %88, %69 : vector<8x128xf32>
    %98 = arith.addf %96, %97 : vector<8x128xf32>
    %c24 = arith.constant 24 : index
    %c0_28 = arith.constant 0 : index
    %99 = vector.load %arg8[%c24, %c0_28] : memref<64x384xf32, #tpu.memory_space<vmem>>, vector<8x384xf32>
    %cst_29 = arith.constant dense<0.000000e+00> : vector<8x384xf32>
    %100 = tpu.matmul %98, %7, %cst_29 {dimension_numbers = #tpu.dot_dimension_numbers<[1], [0], [0], [1], [0, 0, 1, 1], [], []>} : vector<8x128xf32>, vector<128x384xf32>, vector<8x384xf32> -> vector<8x384xf32>
    %101 = arith.addf %100, %10 : vector<8x384xf32>
    %102 = vector.extract_strided_slice %99 {offsets = [0, 0], sizes = [8, 128], strides = [1, 1]} : vector<8x384xf32> to vector<8x128xf32>
    %103 = vector.extract_strided_slice %101 {offsets = [0, 0], sizes = [8, 128], strides = [1, 1]} : vector<8x384xf32> to vector<8x128xf32>
    %104 = arith.addf %102, %103 : vector<8x128xf32>
    %105 = arith.negf %104 : vector<8x128xf32>
    %106 = math.exp %105 : vector<8x128xf32>
    %cst_30 = arith.constant 1.000000e+00 : f32
    %107 = vector.broadcast %cst_30 : f32 to vector<8x128xf32>
    %108 = arith.addf %107, %106 : vector<8x128xf32>
    %109 = arith.divf %107, %108 : vector<8x128xf32>
    %110 = vector.extract_strided_slice %99 {offsets = [0, 128], sizes = [8, 128], strides = [1, 1]} : vector<8x384xf32> to vector<8x128xf32>
    %111 = vector.extract_strided_slice %101 {offsets = [0, 128], sizes = [8, 128], strides = [1, 1]} : vector<8x384xf32> to vector<8x128xf32>
    %112 = arith.addf %110, %111 : vector<8x128xf32>
    %113 = arith.negf %112 : vector<8x128xf32>
    %114 = math.exp %113 : vector<8x128xf32>
    %cst_31 = arith.constant 1.000000e+00 : f32
    %115 = vector.broadcast %cst_31 : f32 to vector<8x128xf32>
    %116 = arith.addf %115, %114 : vector<8x128xf32>
    %117 = arith.divf %115, %116 : vector<8x128xf32>
    %118 = vector.extract_strided_slice %99 {offsets = [0, 256], sizes = [8, 128], strides = [1, 1]} : vector<8x384xf32> to vector<8x128xf32>
    %119 = vector.extract_strided_slice %101 {offsets = [0, 256], sizes = [8, 128], strides = [1, 1]} : vector<8x384xf32> to vector<8x128xf32>
    %120 = arith.mulf %109, %119 : vector<8x128xf32>
    %121 = arith.addf %118, %120 : vector<8x128xf32>
    %122 = math.tanh %121 : vector<8x128xf32>
    %cst_32 = arith.constant 1.000000e+00 : f32
    %123 = vector.broadcast %cst_32 : f32 to vector<8x128xf32>
    %124 = arith.subf %123, %117 : vector<8x128xf32>
    %125 = arith.mulf %124, %122 : vector<8x128xf32>
    %126 = arith.mulf %117, %98 : vector<8x128xf32>
    %127 = arith.addf %125, %126 : vector<8x128xf32>
    %c32 = arith.constant 32 : index
    %c0_33 = arith.constant 0 : index
    %128 = vector.load %arg8[%c32, %c0_33] : memref<64x384xf32, #tpu.memory_space<vmem>>, vector<8x384xf32>
    %cst_34 = arith.constant dense<0.000000e+00> : vector<8x384xf32>
    %129 = tpu.matmul %127, %7, %cst_34 {dimension_numbers = #tpu.dot_dimension_numbers<[1], [0], [0], [1], [0, 0, 1, 1], [], []>} : vector<8x128xf32>, vector<128x384xf32>, vector<8x384xf32> -> vector<8x384xf32>
    %130 = arith.addf %129, %10 : vector<8x384xf32>
    %131 = vector.extract_strided_slice %128 {offsets = [0, 0], sizes = [8, 128], strides = [1, 1]} : vector<8x384xf32> to vector<8x128xf32>
    %132 = vector.extract_strided_slice %130 {offsets = [0, 0], sizes = [8, 128], strides = [1, 1]} : vector<8x384xf32> to vector<8x128xf32>
    %133 = arith.addf %131, %132 : vector<8x128xf32>
    %134 = arith.negf %133 : vector<8x128xf32>
    %135 = math.exp %134 : vector<8x128xf32>
    %cst_35 = arith.constant 1.000000e+00 : f32
    %136 = vector.broadcast %cst_35 : f32 to vector<8x128xf32>
    %137 = arith.addf %136, %135 : vector<8x128xf32>
    %138 = arith.divf %136, %137 : vector<8x128xf32>
    %139 = vector.extract_strided_slice %128 {offsets = [0, 128], sizes = [8, 128], strides = [1, 1]} : vector<8x384xf32> to vector<8x128xf32>
    %140 = vector.extract_strided_slice %130 {offsets = [0, 128], sizes = [8, 128], strides = [1, 1]} : vector<8x384xf32> to vector<8x128xf32>
    %141 = arith.addf %139, %140 : vector<8x128xf32>
    %142 = arith.negf %141 : vector<8x128xf32>
    %143 = math.exp %142 : vector<8x128xf32>
    %cst_36 = arith.constant 1.000000e+00 : f32
    %144 = vector.broadcast %cst_36 : f32 to vector<8x128xf32>
    %145 = arith.addf %144, %143 : vector<8x128xf32>
    %146 = arith.divf %144, %145 : vector<8x128xf32>
    %147 = vector.extract_strided_slice %128 {offsets = [0, 256], sizes = [8, 128], strides = [1, 1]} : vector<8x384xf32> to vector<8x128xf32>
    %148 = vector.extract_strided_slice %130 {offsets = [0, 256], sizes = [8, 128], strides = [1, 1]} : vector<8x384xf32> to vector<8x128xf32>
    %149 = arith.mulf %138, %148 : vector<8x128xf32>
    %150 = arith.addf %147, %149 : vector<8x128xf32>
    %151 = math.tanh %150 : vector<8x128xf32>
    %cst_37 = arith.constant 1.000000e+00 : f32
    %152 = vector.broadcast %cst_37 : f32 to vector<8x128xf32>
    %153 = arith.subf %152, %146 : vector<8x128xf32>
    %154 = arith.mulf %153, %151 : vector<8x128xf32>
    %155 = arith.mulf %146, %127 : vector<8x128xf32>
    %156 = arith.addf %154, %155 : vector<8x128xf32>
    %c40 = arith.constant 40 : index
    %c0_38 = arith.constant 0 : index
    %157 = vector.load %arg8[%c40, %c0_38] : memref<64x384xf32, #tpu.memory_space<vmem>>, vector<8x384xf32>
    %cst_39 = arith.constant dense<0.000000e+00> : vector<8x384xf32>
    %158 = tpu.matmul %156, %7, %cst_39 {dimension_numbers = #tpu.dot_dimension_numbers<[1], [0], [0], [1], [0, 0, 1, 1], [], []>} : vector<8x128xf32>, vector<128x384xf32>, vector<8x384xf32> -> vector<8x384xf32>
    %159 = arith.addf %158, %10 : vector<8x384xf32>
    %160 = vector.extract_strided_slice %157 {offsets = [0, 0], sizes = [8, 128], strides = [1, 1]} : vector<8x384xf32> to vector<8x128xf32>
    %161 = vector.extract_strided_slice %159 {offsets = [0, 0], sizes = [8, 128], strides = [1, 1]} : vector<8x384xf32> to vector<8x128xf32>
    %162 = arith.addf %160, %161 : vector<8x128xf32>
    %163 = arith.negf %162 : vector<8x128xf32>
    %164 = math.exp %163 : vector<8x128xf32>
    %cst_40 = arith.constant 1.000000e+00 : f32
    %165 = vector.broadcast %cst_40 : f32 to vector<8x128xf32>
    %166 = arith.addf %165, %164 : vector<8x128xf32>
    %167 = arith.divf %165, %166 : vector<8x128xf32>
    %168 = vector.extract_strided_slice %157 {offsets = [0, 128], sizes = [8, 128], strides = [1, 1]} : vector<8x384xf32> to vector<8x128xf32>
    %169 = vector.extract_strided_slice %159 {offsets = [0, 128], sizes = [8, 128], strides = [1, 1]} : vector<8x384xf32> to vector<8x128xf32>
    %170 = arith.addf %168, %169 : vector<8x128xf32>
    %171 = arith.negf %170 : vector<8x128xf32>
    %172 = math.exp %171 : vector<8x128xf32>
    %cst_41 = arith.constant 1.000000e+00 : f32
    %173 = vector.broadcast %cst_41 : f32 to vector<8x128xf32>
    %174 = arith.addf %173, %172 : vector<8x128xf32>
    %175 = arith.divf %173, %174 : vector<8x128xf32>
    %176 = vector.extract_strided_slice %157 {offsets = [0, 256], sizes = [8, 128], strides = [1, 1]} : vector<8x384xf32> to vector<8x128xf32>
    %177 = vector.extract_strided_slice %159 {offsets = [0, 256], sizes = [8, 128], strides = [1, 1]} : vector<8x384xf32> to vector<8x128xf32>
    %178 = arith.mulf %167, %177 : vector<8x128xf32>
    %179 = arith.addf %176, %178 : vector<8x128xf32>
    %180 = math.tanh %179 : vector<8x128xf32>
    %cst_42 = arith.constant 1.000000e+00 : f32
    %181 = vector.broadcast %cst_42 : f32 to vector<8x128xf32>
    %182 = arith.subf %181, %175 : vector<8x128xf32>
    %183 = arith.mulf %182, %180 : vector<8x128xf32>
    %184 = arith.mulf %175, %156 : vector<8x128xf32>
    %185 = arith.addf %183, %184 : vector<8x128xf32>
    %c48 = arith.constant 48 : index
    %c0_43 = arith.constant 0 : index
    %186 = vector.load %arg8[%c48, %c0_43] : memref<64x384xf32, #tpu.memory_space<vmem>>, vector<8x384xf32>
    %cst_44 = arith.constant dense<0.000000e+00> : vector<8x384xf32>
    %187 = tpu.matmul %185, %7, %cst_44 {dimension_numbers = #tpu.dot_dimension_numbers<[1], [0], [0], [1], [0, 0, 1, 1], [], []>} : vector<8x128xf32>, vector<128x384xf32>, vector<8x384xf32> -> vector<8x384xf32>
    %188 = arith.addf %187, %10 : vector<8x384xf32>
    %189 = vector.extract_strided_slice %186 {offsets = [0, 0], sizes = [8, 128], strides = [1, 1]} : vector<8x384xf32> to vector<8x128xf32>
    %190 = vector.extract_strided_slice %188 {offsets = [0, 0], sizes = [8, 128], strides = [1, 1]} : vector<8x384xf32> to vector<8x128xf32>
    %191 = arith.addf %189, %190 : vector<8x128xf32>
    %192 = arith.negf %191 : vector<8x128xf32>
    %193 = math.exp %192 : vector<8x128xf32>
    %cst_45 = arith.constant 1.000000e+00 : f32
    %194 = vector.broadcast %cst_45 : f32 to vector<8x128xf32>
    %195 = arith.addf %194, %193 : vector<8x128xf32>
    %196 = arith.divf %194, %195 : vector<8x128xf32>
    %197 = vector.extract_strided_slice %186 {offsets = [0, 128], sizes = [8, 128], strides = [1, 1]} : vector<8x384xf32> to vector<8x128xf32>
    %198 = vector.extract_strided_slice %188 {offsets = [0, 128], sizes = [8, 128], strides = [1, 1]} : vector<8x384xf32> to vector<8x128xf32>
    %199 = arith.addf %197, %198 : vector<8x128xf32>
    %200 = arith.negf %199 : vector<8x128xf32>
    %201 = math.exp %200 : vector<8x128xf32>
    %cst_46 = arith.constant 1.000000e+00 : f32
    %202 = vector.broadcast %cst_46 : f32 to vector<8x128xf32>
    %203 = arith.addf %202, %201 : vector<8x128xf32>
    %204 = arith.divf %202, %203 : vector<8x128xf32>
    %205 = vector.extract_strided_slice %186 {offsets = [0, 256], sizes = [8, 128], strides = [1, 1]} : vector<8x384xf32> to vector<8x128xf32>
    %206 = vector.extract_strided_slice %188 {offsets = [0, 256], sizes = [8, 128], strides = [1, 1]} : vector<8x384xf32> to vector<8x128xf32>
    %207 = arith.mulf %196, %206 : vector<8x128xf32>
    %208 = arith.addf %205, %207 : vector<8x128xf32>
    %209 = math.tanh %208 : vector<8x128xf32>
    %cst_47 = arith.constant 1.000000e+00 : f32
    %210 = vector.broadcast %cst_47 : f32 to vector<8x128xf32>
    %211 = arith.subf %210, %204 : vector<8x128xf32>
    %212 = arith.mulf %211, %209 : vector<8x128xf32>
    %213 = arith.mulf %204, %185 : vector<8x128xf32>
    %214 = arith.addf %212, %213 : vector<8x128xf32>
    %c56 = arith.constant 56 : index
    %c0_48 = arith.constant 0 : index
    %215 = vector.load %arg8[%c56, %c0_48] : memref<64x384xf32, #tpu.memory_space<vmem>>, vector<8x384xf32>
    %cst_49 = arith.constant dense<0.000000e+00> : vector<8x384xf32>
    %216 = tpu.matmul %214, %7, %cst_49 {dimension_numbers = #tpu.dot_dimension_numbers<[1], [0], [0], [1], [0, 0, 1, 1], [], []>} : vector<8x128xf32>, vector<128x384xf32>, vector<8x384xf32> -> vector<8x384xf32>
    %217 = arith.addf %216, %10 : vector<8x384xf32>
    %218 = vector.extract_strided_slice %215 {offsets = [0, 0], sizes = [8, 128], strides = [1, 1]} : vector<8x384xf32> to vector<8x128xf32>
    %219 = vector.extract_strided_slice %217 {offsets = [0, 0], sizes = [8, 128], strides = [1, 1]} : vector<8x384xf32> to vector<8x128xf32>
    %220 = arith.addf %218, %219 : vector<8x128xf32>
    %221 = arith.negf %220 : vector<8x128xf32>
    %222 = math.exp %221 : vector<8x128xf32>
    %cst_50 = arith.constant 1.000000e+00 : f32
    %223 = vector.broadcast %cst_50 : f32 to vector<8x128xf32>
    %224 = arith.addf %223, %222 : vector<8x128xf32>
    %225 = arith.divf %223, %224 : vector<8x128xf32>
    %226 = vector.extract_strided_slice %215 {offsets = [0, 128], sizes = [8, 128], strides = [1, 1]} : vector<8x384xf32> to vector<8x128xf32>
    %227 = vector.extract_strided_slice %217 {offsets = [0, 128], sizes = [8, 128], strides = [1, 1]} : vector<8x384xf32> to vector<8x128xf32>
    %228 = arith.addf %226, %227 : vector<8x128xf32>
    %229 = arith.negf %228 : vector<8x128xf32>
    %230 = math.exp %229 : vector<8x128xf32>
    %cst_51 = arith.constant 1.000000e+00 : f32
    %231 = vector.broadcast %cst_51 : f32 to vector<8x128xf32>
    %232 = arith.addf %231, %230 : vector<8x128xf32>
    %233 = arith.divf %231, %232 : vector<8x128xf32>
    %234 = vector.extract_strided_slice %215 {offsets = [0, 256], sizes = [8, 128], strides = [1, 1]} : vector<8x384xf32> to vector<8x128xf32>
    %235 = vector.extract_strided_slice %217 {offsets = [0, 256], sizes = [8, 128], strides = [1, 1]} : vector<8x384xf32> to vector<8x128xf32>
    %236 = arith.mulf %225, %235 : vector<8x128xf32>
    %237 = arith.addf %234, %236 : vector<8x128xf32>
    %238 = math.tanh %237 : vector<8x128xf32>
    %cst_52 = arith.constant 1.000000e+00 : f32
    %239 = vector.broadcast %cst_52 : f32 to vector<8x128xf32>
    %240 = arith.subf %239, %233 : vector<8x128xf32>
    %241 = arith.mulf %240, %238 : vector<8x128xf32>
    %242 = arith.mulf %233, %214 : vector<8x128xf32>
    %243 = arith.addf %241, %242 : vector<8x128xf32>
    %c0_53 = arith.constant 0 : index
    %c0_54 = arith.constant 0 : index
    %244 = vector.load %arg5[%c0_53, %c0_54] : memref<128x3xf32, #tpu.memory_space<vmem>>, vector<128x3xf32>
    %cst_55 = arith.constant dense<0.000000e+00> : vector<8x3xf32>
    %245 = tpu.matmul %243, %244, %cst_55 {dimension_numbers = #tpu.dot_dimension_numbers<[1], [0], [0], [1], [0, 0, 1, 1], [], []>} : vector<8x128xf32>, vector<128x3xf32>, vector<8x3xf32> -> vector<8x3xf32>
    %c0_56 = arith.constant 0 : index
    %c0_57 = arith.constant 0 : index
    %246 = vector.load %arg6[%c0_56, %c0_57] : memref<1x3xf32, #tpu.memory_space<vmem>>, vector<1x3xf32>
    %247 = vector.broadcast %246 : vector<1x3xf32> to vector<8x3xf32>
    %248 = arith.addf %245, %247 : vector<8x3xf32>
    %c0_58 = arith.constant 0 : index
    %c0_59 = arith.constant 0 : index
    %249 = vector.load %arg7[%c0_58, %c0_59] : memref<8x3xf32, #tpu.memory_space<vmem>>, vector<8x3xf32>
    tpu.vector_store %arg7[%c0_58, %c0_59], %248 {strides = array<i32>} : memref<8x3xf32, #tpu.memory_space<vmem>>, vector<8x3xf32>,
    return
  }
}

</mosaic_0001>

<llo_original>
// kernel: tpu_custom_call.1
$region0: #{tpu_custom_call.1}
  #allocation0 [shape = 'u32[]', space=smem, size = 0x4, offset = 0x4, fixed_abs, tag = 'smem constant byte address 0x4 - core index']
  #allocation1 [shape = 'u32[144,128]{1,0:T(1,128)}', space=vmem, size = 0x12000, scoped, tag = 'internal scratch']
  #allocation2 [shape = 'f32[64,384]{1,0:T(8,128)}', space=vmem, size = 0x18000, scoped, tag = 'scratch operand']
  %s0 = inlined_call_operand.vmem [shape: f32[64,16], index: 0, kind: input, shape index: {}]
  %s1 = inlined_call_operand.vmem [shape: f32[16,384], index: 1, kind: input, shape index: {}]
  %s2 = inlined_call_operand.hbm [shape: f32[128,384], index: 2, kind: input, shape index: {}]
  %s3 = inlined_call_operand.vmem [shape: f32[1,384], index: 3, kind: input, shape index: {}]
  %s4 = inlined_call_operand.vmem [shape: f32[1,384], index: 4, kind: input, shape index: {}]
  %s5 = inlined_call_operand.vmem [shape: f32[128,3], index: 5, kind: input, shape index: {}]
  %s6 = inlined_call_operand.vmem [shape: f32[1,3], index: 6, kind: input, shape index: {}]
  %s7 = inlined_call_operand.vmem [shape: f32[8,3], index: 7, kind: output, shape index: {}]
  %s8 = sld [smem:[#allocation0]]
  $region42: #{tpu_custom_call.1} parent=0
    _
  %s10 = ssub.s32 1, %s8
  %s11 = scalar_select 0, %s10, %s8
  $region1: #{tpu_custom_call.1} parent=0
    #allocation3 [shape = 'u8[196608]{0}', space=vmem, size = 0x30000, scoped, tag = 'input window, operand 2, single buffered']
    #allocation4 [shape = 's32[1]{0}', space=sflag, size = 0x4, scoped, tag = 'scoped memory for tpu_custom_call.1']
    %12 = vsyncpa [#allocation4], 0
    // Predicated region
    $region2: #{tpu_custom_call.1} parent=1 // pred_check
      _
    $region3: #{tpu_custom_call.1} parent=1 // pred_check_branch
      %14 = sbr.rel (0) target = $region5
    $region4: #{tpu_custom_call.1} parent=1 // pred_region
      _
    $region5: #{tpu_custom_call.1} parent=1 // pred_fallthru
      _
    // Predicated region
    $region6: #{tpu_custom_call.1} parent=1 // pred_check
      _
    $region7: #{tpu_custom_call.1} parent=1 // pred_check_branch
      %16 = sbr.rel (0) target = $region9
    $region8: #{tpu_custom_call.1} parent=1 // pred_region
      _
    $region9: #{tpu_custom_call.1} parent=1 // pred_fallthru
      _
    // Predicated region
    $region10: #{tpu_custom_call.1} parent=1 // pred_check
      _
    $region11: #{tpu_custom_call.1} parent=1 // pred_check_branch
      %18 = sbr.rel (0) target = $region13
    $region12: #{tpu_custom_call.1} parent=1 // pred_region
      %s20 = ssub.s32 6144, 6144
      %21 = vsyncadd [#allocation4], %s20
      %s22 = sshll.u32 [#allocation3], 4
      %s23 = int_to_ptr.vmem [resolvable:$true] %s22
      %28 = dma.hbm_to_vmem [thread:$0]  %s2, 6144, %s23, [#allocation4], 384, 384, 24
    $region13: #{tpu_custom_call.1} parent=1 // pred_fallthru
      _
    // Predicated region
    $region14: #{tpu_custom_call.1} parent=1 // pred_check
      _
    $region15: #{tpu_custom_call.1} parent=1 // pred_check_branch
      %30 = sbr.rel (0) target = $region17
    $region16: #{tpu_custom_call.1} parent=1 // pred_region
      _
    $region17: #{tpu_custom_call.1} parent=1 // pred_fallthru
      _
    // Predicated region
    $region18: #{tpu_custom_call.1} parent=1 // pred_check
      _
    $region19: #{tpu_custom_call.1} parent=1 // pred_check_branch
      %32 = sbr.rel (0) target = $region21
    $region20: #{tpu_custom_call.1} parent=1 // pred_region
      _
    $region21: #{tpu_custom_call.1} parent=1 // pred_fallthru
      _
    // Predicated region
    $region22: #{tpu_custom_call.1} parent=1 // pred_check
      _
    $region23: #{tpu_custom_call.1} parent=1 // pred_check_branch
      %34 = sbr.rel (0) target = $region25
    $region24: #{tpu_custom_call.1} parent=1 // pred_region
      _
    $region25: #{tpu_custom_call.1} parent=1 // pred_fallthru
      _
    // Predicated region
    $region26: #{tpu_custom_call.1} parent=1 // pred_check
      _
    $region27: #{tpu_custom_call.1} parent=1 // pred_check_branch
      %36 = sbr.rel (0) target = $region29
    $region28: #{tpu_custom_call.1} parent=1 // pred_region
      _
    $region29: #{tpu_custom_call.1} parent=1 // pred_fallthru
      _
    // Predicated region
    $region30: #{tpu_custom_call.1} parent=1 // pred_check
      _
    $region31: #{tpu_custom_call.1} parent=1 // pred_check_branch
      %38 = sbr.rel (0) target = $region33
    $region32: #{tpu_custom_call.1} parent=1 // pred_region
      %39 = dma.done [#allocation4], 6144
    $region33: #{tpu_custom_call.1} parent=1 // pred_fallthru
      _
    %v40 = vld [vmem:[%s0] sm:$0xff]
    %v41 = vld [vmem:[%s0 + $0x8] sm:$0xff]
    %v42 = vld [vmem:[%s0 + $0x10] sm:$0xff]
    %v43 = vld [vmem:[%s0 + $0x18] sm:$0xff]
    %v44 = vld [vmem:[%s0 + $0x20] sm:$0xff]
    %v45 = vld [vmem:[%s0 + $0x28] sm:$0xff]
    %v46 = vld [vmem:[%s0 + $0x30] sm:$0xff]
    %v47 = vld [vmem:[%s0 + $0x38] sm:$0xff]
    %v48 = vld [vmem:[%s1] sm:$0xff]
    %v49 = vld [vmem:[%s1 + $0x8] sm:$0xff]
    %v50 = vld [vmem:[%s1 + $0x10] sm:$0xff]
    %v51 = vld [vmem:[%s1 + $0x18] sm:$0xff]
    %v52 = vld [vmem:[%s1 + $0x20] sm:$0xff]
    %v53 = vld [vmem:[%s1 + $0x28] sm:$0xff]
    %v54 = vld [vmem:[%s3] sm:$0x7]
    %v56 = vlaneseq
    %v57 = vshrl.u32 %v56, 7
    %v58 = vsub.s32 0, %v57
    %v59 = vrot.slane %v54, %v58
    %v60 = vlaneseq
    %v61 = vshrl.u32 %v60, 7
    %v62 = vsub.s32 1, %v61
    %v63 = vrot.slane %v54, %v62
    %v64 = vlaneseq
    %v65 = vshrl.u32 %v64, 7
    %v66 = vsub.s32 2, %v65
    %v67 = vrot.slane %v54, %v66
    %vm71 = vcmask 130048
    %v73 = vsel %vm71, %v40, 0
    %v76 = vsel %vm71, %v41, 0
    %v79 = vsel %vm71, %v42, 0
    %v82 = vsel %vm71, %v43, 0
    %v85 = vsel %vm71, %v44, 0
    %v88 = vsel %vm71, %v45, 0
    %v91 = vsel %vm71, %v46, 0
    %v94 = vsel %vm71, %v47, 0
    %96 = vmatprep.subr.mxu0 %v49
    %97 = vmatpush1.msra.mxu0 %v48
    %98 = vmatprep.subr.mxu0 %v52
    %99 = vmatpush1.msra.mxu0 %v51
    %100 = vmatprep.subr.mxu0 0.0
    %101 = vmatpush1.msra.mxu0 0.0
    %102 = vmatprep.subr.mxu0 0.0
    %103 = vmatpush1.msra.mxu0 0.0
    %104 = vmatprep.subr.mxu0 0.0
    %105 = vmatpush1.msra.mxu0 0.0
    %106 = vmatprep.subr.mxu0 0.0
    %107 = vmatpush1.msra.mxu0 0.0
    %108 = vmatprep.subr.mxu0 0.0
    %109 = vmatpush1.msra.mxu0 0.0
    %110 = vmatprep.subr.mxu0 0.0
    %111 = vmatpush1.msra.mxu0 0.0
    %112 = vmatprep.subr.mxu0 0.0
    %113 = vmatpush1.msra.mxu0 0.0
    %114 = vmatprep.subr.mxu0 0.0
    %115 = vmatpush1.msra.mxu0 0.0
    %116 = vmatprep.subr.mxu0 0.0
    %117 = vmatpush1.msra.mxu0 0.0
    %118 = vmatprep.subr.mxu0 0.0
    %119 = vmatpush1.msra.mxu0 0.0
    %120 = vmatprep.subr.mxu0 0.0
    %121 = vmatpush1.msra.mxu0 0.0
    %122 = vmatprep.subr.mxu0 0.0
    %123 = vmatpush1.msra.mxu0 0.0
    %124 = vmatprep.subr.mxu0 0.0
    %125 = vmatpush1.msra.mxu0 0.0
    %126 = vmatprep.subr.mxu0 0.0
    %127 = vmatpush1.msra.mxu0 0.0
    %128 = vmatprep.subr.mxu0 0.0
    %129 = vmatpush1.msra.mxu0 0.0
    %130 = vmatprep.subr.mxu0 0.0
    %131 = vmatpush1.msra.mxu0 0.0
    %132 = vmatprep.subr.mxu0 0.0
    %133 = vmatpush1.msra.mxu0 0.0
    %134 = vmatprep.subr.mxu0 0.0
    %135 = vmatpush1.msra.mxu0 0.0
    %136 = vmatprep.subr.mxu0 0.0
    %137 = vmatpush1.msra.mxu0 0.0
    %138 = vmatprep.subr.mxu0 0.0
    %139 = vmatpush1.msra.mxu0 0.0
    %140 = vmatprep.subr.mxu0 0.0
    %141 = vmatpush1.msra.mxu0 0.0
    %142 = vmatprep.subr.mxu0 0.0
    %143 = vmatpush1.msra.mxu0 0.0
    %144 = vmatprep.subr.mxu0 0.0
    %145 = vmatpush1.msra.mxu0 0.0
    %146 = vmatprep.subr.mxu0 0.0
    %147 = vmatpush1.msra.mxu0 0.0
    %148 = vmatprep.subr.mxu0 0.0
    %149 = vmatpush1.msra.mxu0 0.0
    %150 = vmatprep.subr.mxu0 0.0
    %151 = vmatpush1.msra.mxu0 0.0
    %152 = vmatprep.subr.mxu0 0.0
    %153 = vmatpush1.msra.mxu0 0.0
    %154 = vmatprep.subr.mxu0 0.0
    %155 = vmatpush1.msra.mxu0 0.0
    %156 = vmatprep.subr.mxu0 0.0
    %157 = vmatpush1.msra.mxu0 0.0
    %158 = vmatprep.subr.mxu0 0.0
    %159 = vmatpush1.msra.mxu0 0.0
    %160 = vmatprep.mubr.f32.mxu0 0.0
    %161 = vmatmul.mubr.f32.gmra.mrb[0].mxu0 %v73
    %v162 = vpop.f32.mrb[0].mxu0
    %v163 = vadd.f32 %v59, %v162
    %v164 = vpop.f32.mrb[0].mxu0
    %v165 = vadd.f32 %v63, %v164
    %166 = vmatprep.mubr.f32.mxu0 0.0
    %167 = vmatmul.mubr.f32.gmra.mrb[0].mxu0 %v76
    %v168 = vpop.f32.mrb[0].mxu0
    %v169 = vadd.f32 %v59, %v168
    %v170 = vpop.f32.mrb[0].mxu0
    %v171 = vadd.f32 %v63, %v170
    %172 = vmatprep.mubr.f32.mxu0 0.0
    %173 = vmatmul.mubr.f32.gmra.mrb[0].mxu0 %v79
    %v174 = vpop.f32.mrb[0].mxu0
    %v175 = vadd.f32 %v59, %v174
    %v176 = vpop.f32.mrb[0].mxu0
    %v177 = vadd.f32 %v63, %v176
    %178 = vmatprep.mubr.f32.mxu0 0.0
    %179 = vmatmul.mubr.f32.gmra.mrb[0].mxu0 %v82
    %v180 = vpop.f32.mrb[0].mxu0
    %v181 = vadd.f32 %v59, %v180
    %v182 = vpop.f32.mrb[0].mxu0
    %v183 = vadd.f32 %v63, %v182
    %184 = vmatprep.mubr.f32.mxu0 0.0
    %185 = vmatmul.mubr.f32.gmra.mrb[0].mxu0 %v85
    %v186 = vpop.f32.mrb[0].mxu0
    %v187 = vadd.f32 %v59, %v186
    %v188 = vpop.f32.mrb[0].mxu0
    %v189 = vadd.f32 %v63, %v188
    %190 = vmatprep.mubr.f32.mxu0 0.0
    %191 = vmatmul.mubr.f32.gmra.mrb[0].mxu0 %v88
    %v192 = vpop.f32.mrb[0].mxu0
    %v193 = vadd.f32 %v59, %v192
    %v194 = vpop.f32.mrb[0].mxu0
    %v195 = vadd.f32 %v63, %v194
    %196 = vmatprep.mubr.f32.mxu0 0.0
    %197 = vmatmul.mubr.f32.gmra.mrb[0].mxu0 %v91
    %v198 = vpop.f32.mrb[0].mxu0
    %v199 = vadd.f32 %v59, %v198
    %v200 = vpop.f32.mrb[0].mxu0
    %v201 = vadd.f32 %v63, %v200
    %202 = vmatprep.mubr.f32.mxu0 0.0
    %203 = vmatmul.mubr.f32.gmra.mrb[0].mxu0 %v94
    %v204 = vpop.f32.mrb[0].mxu0
    %v205 = vadd.f32 %v59, %v204
    %v206 = vpop.f32.mrb[0].mxu0
    %v207 = vadd.f32 %v63, %v206
    %208 = vdwg.mxu0
    %209 = vmatprep.subr.mxu0 0.0
    %210 = vmatpush1.msra.mxu0 %v50
    %211 = vmatprep.subr.mxu0 0.0
    %212 = vmatpush1.msra.mxu0 %v53
    %213 = vmatprep.subr.mxu0 0.0
    %214 = vmatpush1.msra.mxu0 0.0
    %215 = vmatprep.subr.mxu0 0.0
    %216 = vmatpush1.msra.mxu0 0.0
    %217 = vmatprep.subr.mxu0 0.0
    %218 = vmatpush1.msra.mxu0 0.0
    %219 = vmatprep.subr.mxu0 0.0
    %220 = vmatpush1.msra.mxu0 0.0
    %221 = vmatprep.subr.mxu0 0.0
    %222 = vmatpush1.msra.mxu0 0.0
    %223 = vmatprep.subr.mxu0 0.0
    %224 = vmatpush1.msra.mxu0 0.0
    %225 = vmatprep.subr.mxu0 0.0
    %226 = vmatpush1.msra.mxu0 0.0
    %227 = vmatprep.subr.mxu0 0.0
    %228 = vmatpush1.msra.mxu0 0.0
    %229 = vmatprep.subr.mxu0 0.0
    %230 = vmatpush1.msra.mxu0 0.0
    %231 = vmatprep.subr.mxu0 0.0
    %232 = vmatpush1.msra.mxu0 0.0
    %233 = vmatprep.subr.mxu0 0.0
    %234 = vmatpush1.msra.mxu0 0.0
    %235 = vmatprep.subr.mxu0 0.0
    %236 = vmatpush1.msra.mxu0 0.0
    %237 = vmatprep.subr.mxu0 0.0
    %238 = vmatpush1.msra.mxu0 0.0
    %239 = vmatprep.subr.mxu0 0.0
    %240 = vmatpush1.msra.mxu0 0.0
    %241 = vmatprep.subr.mxu0 0.0
    %242 = vmatpush1.msra.mxu0 0.0
    %243 = vmatprep.subr.mxu0 0.0
    %244 = vmatpush1.msra.mxu0 0.0
    %245 = vmatprep.subr.mxu0 0.0
    %246 = vmatpush1.msra.mxu0 0.0
    %247 = vmatprep.subr.mxu0 0.0
    %248 = vmatpush1.msra.mxu0 0.0
    %249 = vmatprep.subr.mxu0 0.0
    %250 = vmatpush1.msra.mxu0 0.0
    %251 = vmatprep.subr.mxu0 0.0
    %252 = vmatpush1.msra.mxu0 0.0
    %253 = vmatprep.subr.mxu0 0.0
    %254 = vmatpush1.msra.mxu0 0.0
    %255 = vmatprep.subr.mxu0 0.0
    %256 = vmatpush1.msra.mxu0 0.0
    %257 = vmatprep.subr.mxu0 0.0
    %258 = vmatpush1.msra.mxu0 0.0
    %259 = vmatprep.subr.mxu0 0.0
    %260 = vmatpush1.msra.mxu0 0.0
    %261 = vmatprep.subr.mxu0 0.0
    %262 = vmatpush1.msra.mxu0 0.0
    %263 = vmatprep.subr.mxu0 0.0
    %264 = vmatpush1.msra.mxu0 0.0
    %265 = vmatprep.subr.mxu0 0.0
    %266 = vmatpush1.msra.mxu0 0.0
    %267 = vmatprep.subr.mxu0 0.0
    %268 = vmatpush1.msra.mxu0 0.0
    %269 = vmatprep.subr.mxu0 0.0
    %270 = vmatpush1.msra.mxu0 0.0
    %271 = vmatprep.subr.mxu0 0.0
    %272 = vmatpush1.msra.mxu0 0.0
    %273 = vmatprep.mubr.f32.mxu0 0.0
    %274 = vmatmul.mubr.f32.gmra.mrb[0].mxu0 %v73
    %v275 = vpop.f32.mrb[0].mxu0
    %v276 = vadd.f32 %v67, %v275
    %v277 = vpop.f32.mrb[0].mxu0
    %278 = vmatprep.mubr.f32.mxu0 0.0
    %279 = vmatmul.mubr.f32.gmra.mrb[0].mxu0 %v76
    %v280 = vpop.f32.mrb[0].mxu0
    %v281 = vadd.f32 %v67, %v280
    %v282 = vpop.f32.mrb[0].mxu0
    %283 = vmatprep.mubr.f32.mxu0 0.0
    %284 = vmatmul.mubr.f32.gmra.mrb[0].mxu0 %v79
    %v285 = vpop.f32.mrb[0].mxu0
    %v286 = vadd.f32 %v67, %v285
    %v287 = vpop.f32.mrb[0].mxu0
    %288 = vmatprep.mubr.f32.mxu0 0.0
    %289 = vmatmul.mubr.f32.gmra.mrb[0].mxu0 %v82
    %v290 = vpop.f32.mrb[0].mxu0
    %v291 = vadd.f32 %v67, %v290
    %v292 = vpop.f32.mrb[0].mxu0
    %293 = vmatprep.mubr.f32.mxu0 0.0
    %294 = vmatmul.mubr.f32.gmra.mrb[0].mxu0 %v85
    %v295 = vpop.f32.mrb[0].mxu0
    %v296 = vadd.f32 %v67, %v295
    %v297 = vpop.f32.mrb[0].mxu0
    %298 = vmatprep.mubr.f32.mxu0 0.0
    %299 = vmatmul.mubr.f32.gmra.mrb[0].mxu0 %v88
    %v300 = vpop.f32.mrb[0].mxu0
    %v301 = vadd.f32 %v67, %v300
    %v302 = vpop.f32.mrb[0].mxu0
    %303 = vmatprep.mubr.f32.mxu0 0.0
    %304 = vmatmul.mubr.f32.gmra.mrb[0].mxu0 %v91
    %v305 = vpop.f32.mrb[0].mxu0
    %v306 = vadd.f32 %v67, %v305
    %v307 = vpop.f32.mrb[0].mxu0
    %308 = vmatprep.mubr.f32.mxu0 0.0
    %309 = vmatmul.mubr.f32.gmra.mrb[0].mxu0 %v94
    %v310 = vpop.f32.mrb[0].mxu0
    %v311 = vadd.f32 %v67, %v310
    %v312 = vpop.f32.mrb[0].mxu0
    %313 = vdwg.mxu0
    %314 = vst [vmem:[#allocation2] sm:$0xff] %v163
    %315 = vst [vmem:[#allocation2 + $0x8] sm:$0xff] %v165
    %316 = vst [vmem:[#allocation2 + $0x10] sm:$0xff] %v276
    %317 = vst [vmem:[#allocation2 + $0x18] sm:$0xff] %v169
    %318 = vst [vmem:[#allocation2 + $0x20] sm:$0xff] %v171
    %319 = vst [vmem:[#allocation2 + $0x28] sm:$0xff] %v281
    %320 = vst [vmem:[#allocation2 + $0x30] sm:$0xff] %v175
    %321 = vst [vmem:[#allocation2 + $0x38] sm:$0xff] %v177
    %322 = vst [vmem:[#allocation2 + $0x40] sm:$0xff] %v286
    %323 = vst [vmem:[#allocation2 + $0x48] sm:$0xff] %v181
    %324 = vst [vmem:[#allocation2 + $0x50] sm:$0xff] %v183
    %325 = vst [vmem:[#allocation2 + $0x58] sm:$0xff] %v291
    %326 = vst [vmem:[#allocation2 + $0x60] sm:$0xff] %v187
    %327 = vst [vmem:[#allocation2 + $0x68] sm:$0xff] %v189
    %328 = vst [vmem:[#allocation2 + $0x70] sm:$0xff] %v296
    %329 = vst [vmem:[#allocation2 + $0x78] sm:$0xff] %v193
    %330 = vst [vmem:[#allocation2 + $0x80] sm:$0xff] %v195
    %331 = vst [vmem:[#allocation2 + $0x88] sm:$0xff] %v301
    %332 = vst [vmem:[#allocation2 + $0x90] sm:$0xff] %v199
    %333 = vst [vmem:[#allocation2 + $0x98] sm:$0xff] %v201
    %334 = vst [vmem:[#allocation2 + $0xa0] sm:$0xff] %v306
    %335 = vst [vmem:[#allocation2 + $0xa8] sm:$0xff] %v205
    %336 = vst [vmem:[#allocation2 + $0xb0] sm:$0xff] %v207
    %337 = vst [vmem:[#allocation2 + $0xb8] sm:$0xff] %v311
    %v338 = vld [vmem:[#allocation3] sm:$0xff]
    %v339 = vld [vmem:[#allocation3 + $0x8] sm:$0xff]
    %v340 = vld [vmem:[#allocation3 + $0x10] sm:$0xff]
    %v341 = vld [vmem:[#allocation3 + $0x18] sm:$0xff]
    %v342 = vld [vmem:[#allocation3 + $0x20] sm:$0xff]
    %v343 = vld [vmem:[#allocation3 + $0x28] sm:$0xff]
    %v344 = vld [vmem:[#allocation3 + $0x30] sm:$0xff]
    %v345 = vld [vmem:[#allocation3 + $0x38] sm:$0xff]
    %v346 = vld [vmem:[#allocation3 + $0x40] sm:$0xff]
    %v347 = vld [vmem:[#allocation3 + $0x48] sm:$0xff]
    %v348 = vld [vmem:[#allocation3 + $0x50] sm:$0xff]
    %v349 = vld [vmem:[#allocation3 + $0x58] sm:$0xff]
    %v350 = vld [vmem:[#allocation3 + $0x60] sm:$0xff]
    %v351 = vld [vmem:[#allocation3 + $0x68] sm:$0xff]
    %v352 = vld [vmem:[#allocation3 + $0x70] sm:$0xff]
    %v353 = vld [vmem:[#allocation3 + $0x78] sm:$0xff]
    %v354 = vld [vmem:[#allocation3 + $0x80] sm:$0xff]
    %v355 = vld [vmem:[#allocation3 + $0x88] sm:$0xff]
    %v356 = vld [vmem:[#allocation3 + $0x90] sm:$0xff]
    %v357 = vld [vmem:[#allocation3 + $0x98] sm:$0xff]
    %v358 = vld [vmem:[#allocation3 + $0xa0] sm:$0xff]
    %v359 = vld [vmem:[#allocation3 + $0xa8] sm:$0xff]
    %v360 = vld [vmem:[#allocation3 + $0xb0] sm:$0xff]
    %v361 = vld [vmem:[#allocation3 + $0xb8] sm:$0xff]
    %v362 = vld [vmem:[#allocation3 + $0xc0] sm:$0xff]
    %v363 = vld [vmem:[#allocation3 + $0xc8] sm:$0xff]
    %v364 = vld [vmem:[#allocation3 + $0xd0] sm:$0xff]
    %v365 = vld [vmem:[#allocation3 + $0xd8] sm:$0xff]
    %v366 = vld [vmem:[#allocation3 + $0xe0] sm:$0xff]
    %v367 = vld [vmem:[#allocation3 + $0xe8] sm:$0xff]
    %v368 = vld [vmem:[#allocation3 + $0xf0] sm:$0xff]
    %v369 = vld [vmem:[#allocation3 + $0xf8] sm:$0xff]
    %v370 = vld [vmem:[#allocation3 + $0x100] sm:$0xff]
    %v371 = vld [vmem:[#allocation3 + $0x108] sm:$0xff]
    %v372 = vld [vmem:[#allocation3 + $0x110] sm:$0xff]
    %v373 = vld [vmem:[#allocation3 + $0x118] sm:$0xff]
    %v374 = vld [vmem:[#allocation3 + $0x120] sm:$0xff]
    %v375 = vld [vmem:[#allocation3 + $0x128] sm:$0xff]
    %v376 = vld [vmem:[#allocation3 + $0x130] sm:$0xff]
    %v377 = vld [vmem:[#allocation3 + $0x138] sm:$0xff]
    %v378 = vld [vmem:[#allocation3 + $0x140] sm:$0xff]
    %v379 = vld [vmem:[#allocation3 + $0x148] sm:$0xff]
    %v380 = vld [vmem:[#allocation3 + $0x150] sm:$0xff]
    %v381 = vld [vmem:[#allocation3 + $0x158] sm:$0xff]
    %v382 = vld [vmem:[#allocation3 + $0x160] sm:$0xff]
    %v383 = vld [vmem:[#allocation3 + $0x168] sm:$0xff]
    %v384 = vld [vmem:[#allocation3 + $0x170] sm:$0xff]
    %v385 = vld [vmem:[#allocation3 + $0x178] sm:$0xff]
    %v386 = vld [vmem:[%s4] sm:$0x7]
    %v388 = vlaneseq
    %v389 = vshrl.u32 %v388, 7
    %v390 = vsub.s32 0, %v389
    %v391 = vrot.slane %v386, %v390
    %v392 = vlaneseq
    %v393 = vshrl.u32 %v392, 7
    %v394 = vsub.s32 1, %v393
    %v395 = vrot.slane %v386, %v394
    %v396 = vlaneseq
    %v397 = vshrl.u32 %v396, 7
    %v398 = vsub.s32 2, %v397
    %v399 = vrot.slane %v386, %v398
    %v403 = vld [vmem:[#allocation2] sm:$0xff]
    %v404 = vld [vmem:[#allocation2 + $0x8] sm:$0xff]
    %v405 = vld [vmem:[#allocation2 + $0x10] sm:$0xff]
    %406 = vmatprep.subr.mxu0 %v339
    %407 = vmatpush1.msra.mxu0 %v338
    %408 = vmatprep.subr.mxu0 %v342
    %409 = vmatpush1.msra.mxu0 %v341
    %410 = vmatprep.subr.mxu0 %v345
    %411 = vmatpush1.msra.mxu0 %v344
    %412 = vmatprep.subr.mxu0 %v348
    %413 = vmatpush1.msra.mxu0 %v347
    %414 = vmatprep.subr.mxu0 %v351
    %415 = vmatpush1.msra.mxu0 %v350
    %416 = vmatprep.subr.mxu0 %v354
    %417 = vmatpush1.msra.mxu0 %v353
    %418 = vmatprep.subr.mxu0 %v357
    %419 = vmatpush1.msra.mxu0 %v356
    %420 = vmatprep.subr.mxu0 %v360
    %421 = vmatpush1.msra.mxu0 %v359
    %422 = vmatprep.subr.mxu0 %v363
    %423 = vmatpush1.msra.mxu0 %v362
    %424 = vmatprep.subr.mxu0 %v366
    %425 = vmatpush1.msra.mxu0 %v365
    %426 = vmatprep.subr.mxu0 %v369
    %427 = vmatpush1.msra.mxu0 %v368
    %428 = vmatprep.subr.mxu0 %v372
    %429 = vmatpush1.msra.mxu0 %v371
    %430 = vmatprep.subr.mxu0 %v375
    %431 = vmatpush1.msra.mxu0 %v374
    %432 = vmatprep.subr.mxu0 %v378
    %433 = vmatpush1.msra.mxu0 %v377
    %434 = vmatprep.subr.mxu0 %v381
    %435 = vmatpush1.msra.mxu0 %v380
    %436 = vmatprep.subr.mxu0 %v384
    %437 = vmatpush1.msra.mxu0 %v383
    %438 = vmatprep.subr.mxu0 0.0
    %439 = vmatpush1.msra.mxu0 0.0
    %440 = vmatprep.subr.mxu0 0.0
    %441 = vmatpush1.msra.mxu0 0.0
    %442 = vmatprep.subr.mxu0 0.0
    %443 = vmatpush1.msra.mxu0 0.0
    %444 = vmatprep.subr.mxu0 0.0
    %445 = vmatpush1.msra.mxu0 0.0
    %446 = vmatprep.subr.mxu0 0.0
    %447 = vmatpush1.msra.mxu0 0.0
    %448 = vmatprep.subr.mxu0 0.0
    %449 = vmatpush1.msra.mxu0 0.0
    %450 = vmatprep.subr.mxu0 0.0
    %451 = vmatpush1.msra.mxu0 0.0
    %452 = vmatprep.subr.mxu0 0.0
    %453 = vmatpush1.msra.mxu0 0.0
    %454 = vmatprep.subr.mxu0 0.0
    %455 = vmatpush1.msra.mxu0 0.0
    %456 = vmatprep.subr.mxu0 0.0
    %457 = vmatpush1.msra.mxu0 0.0
    %458 = vmatprep.subr.mxu0 0.0
    %459 = vmatpush1.msra.mxu0 0.0
    %460 = vmatprep.subr.mxu0 0.0
    %461 = vmatpush1.msra.mxu0 0.0
    %462 = vmatprep.subr.mxu0 0.0
    %463 = vmatpush1.msra.mxu0 0.0
    %464 = vmatprep.subr.mxu0 0.0
    %465 = vmatpush1.msra.mxu0 0.0
    %466 = vmatprep.subr.mxu0 0.0
    %467 = vmatpush1.msra.mxu0 0.0
    %468 = vmatprep.subr.mxu0 0.0
    %469 = vmatpush1.msra.mxu0 0.0
    %470 = vmatprep.mubr.f32.mxu0 0.0
    %471 = vmatmul.mubr.f32.gmra.mrb[0].mxu0 0.0
    %v472 = vpop.f32.mrb[0].mxu0
    %v473 = vadd.f32 %v391, %v472
    %v474 = vpop.f32.mrb[0].mxu0
    %v475 = vadd.f32 %v395, %v474
    %476 = vdwg.mxu0
    %477 = vmatprep.subr.mxu0 0.0
    %478 = vmatpush1.msra.mxu0 %v340
    %479 = vmatprep.subr.mxu0 0.0
    %480 = vmatpush1.msra.mxu0 %v343
    %481 = vmatprep.subr.mxu0 0.0
    %482 = vmatpush1.msra.mxu0 %v346
    %483 = vmatprep.subr.mxu0 0.0
    %484 = vmatpush1.msra.mxu0 %v349
    %485 = vmatprep.subr.mxu0 0.0
    %486 = vmatpush1.msra.mxu0 %v352
    %487 = vmatprep.subr.mxu0 0.0
    %488 = vmatpush1.msra.mxu0 %v355
    %489 = vmatprep.subr.mxu0 0.0
    %490 = vmatpush1.msra.mxu0 %v358
    %491 = vmatprep.subr.mxu0 0.0
    %492 = vmatpush1.msra.mxu0 %v361
    %493 = vmatprep.subr.mxu0 0.0
    %494 = vmatpush1.msra.mxu0 %v364
    %495 = vmatprep.subr.mxu0 0.0
    %496 = vmatpush1.msra.mxu0 %v367
    %497 = vmatprep.subr.mxu0 0.0
    %498 = vmatpush1.msra.mxu0 %v370
    %499 = vmatprep.subr.mxu0 0.0
    %500 = vmatpush1.msra.mxu0 %v373
    %501 = vmatprep.subr.mxu0 0.0
    %502 = vmatpush1.msra.mxu0 %v376
    %503 = vmatprep.subr.mxu0 0.0
    %504 = vmatpush1.msra.mxu0 %v379
    %505 = vmatprep.subr.mxu0 0.0
    %506 = vmatpush1.msra.mxu0 %v382
    %507 = vmatprep.subr.mxu0 0.0
    %508 = vmatpush1.msra.mxu0 %v385
    %509 = vmatprep.subr.mxu0 0.0
    %510 = vmatpush1.msra.mxu0 0.0
    %511 = vmatprep.subr.mxu0 0.0
    %512 = vmatpush1.msra.mxu0 0.0
    %513 = vmatprep.subr.mxu0 0.0
    %514 = vmatpush1.msra.mxu0 0.0
    %515 = vmatprep.subr.mxu0 0.0
    %516 = vmatpush1.msra.mxu0 0.0
    %517 = vmatprep.subr.mxu0 0.0
    %518 = vmatpush1.msra.mxu0 0.0
    %519 = vmatprep.subr.mxu0 0.0
    %520 = vmatpush1.msra.mxu0 0.0
    %521 = vmatprep.subr.mxu0 0.0
    %522 = vmatpush1.msra.mxu0 0.0
    %523 = vmatprep.subr.mxu0 0.0
    %524 = vmatpush1.msra.mxu0 0.0
    %525 = vmatprep.subr.mxu0 0.0
    %526 = vmatpush1.msra.mxu0 0.0
    %527 = vmatprep.subr.mxu0 0.0
    %528 = vmatpush1.msra.mxu0 0.0
    %529 = vmatprep.subr.mxu0 0.0
    %530 = vmatpush1.msra.mxu0 0.0
    %531 = vmatprep.subr.mxu0 0.0
    %532 = vmatpush1.msra.mxu0 0.0
    %533 = vmatprep.subr.mxu0 0.0
    %534 = vmatpush1.msra.mxu0 0.0
    %535 = vmatprep.subr.mxu0 0.0
    %536 = vmatpush1.msra.mxu0 0.0
    %537 = vmatprep.subr.mxu0 0.0
    %538 = vmatpush1.msra.mxu0 0.0
    %539 = vmatprep.subr.mxu0 0.0
    %540 = vmatpush1.msra.mxu0 0.0
    %541 = vmatprep.mubr.f32.mxu0 0.0
    %542 = vmatmul.mubr.f32.gmra.mrb[0].mxu0 0.0
    %v543 = vpop.f32.mrb[0].mxu0
    %v544 = vadd.f32 %v399, %v543
    %v545 = vpop.f32.mrb[0].mxu0
    %546 = vdwg.mxu0
    %v547 = vadd.f32 %v403, %v473
    %v548 = vxor.u32 %v547, 2147483648
    %v549 = vmul.f32 %v548, 1.442695
    %v550 = vpow.pop %v549
    %v551 = vadd.f32 %v550, 1.0
    %v552 = vrcp.pop %v551
    %v553 = vmul.f32 1.0, %v552
    %v554 = vadd.f32 %v404, %v475
    %v555 = vxor.u32 %v554, 2147483648
    %v556 = vmul.f32 %v555, 1.442695
    %v557 = vpow.pop %v556
    %v558 = vadd.f32 %v557, 1.0
    %v559 = vrcp.pop %v558
    %v560 = vmul.f32 1.0, %v559
    %v561 = vmul.f32 %v553, %v544
    %v562 = vadd.f32 %v405, %v561
    %v563 = vtanh.pop %v562
    %v564 = vsub.f32 1.0, %v560
    %v565 = vmul.f32 %v564, %v563
    %v566 = vmul.f32 %v560, 0.0
    %v567 = vadd.f32 %v565, %v566
    %v568 = vld [vmem:[#allocation2 + $0x18] sm:$0xff]
    %v569 = vld [vmem:[#allocation2 + $0x20] sm:$0xff]
    %v570 = vld [vmem:[#allocation2 + $0x28] sm:$0xff]
    %571 = vmatprep.subr.mxu0 %v339
    %572 = vmatpush1.msra.mxu0 %v338
    %573 = vmatprep.subr.mxu0 %v342
    %574 = vmatpush1.msra.mxu0 %v341
    %575 = vmatprep.subr.mxu0 %v345
    %576 = vmatpush1.msra.mxu0 %v344
    %577 = vmatprep.subr.mxu0 %v348
    %578 = vmatpush1.msra.mxu0 %v347
    %579 = vmatprep.subr.mxu0 %v351
    %580 = vmatpush1.msra.mxu0 %v350
    %581 = vmatprep.subr.mxu0 %v354
    %582 = vmatpush1.msra.mxu0 %v353
    %583 = vmatprep.subr.mxu0 %v357
    %584 = vmatpush1.msra.mxu0 %v356
    %585 = vmatprep.subr.mxu0 %v360
    %586 = vmatpush1.msra.mxu0 %v359
    %587 = vmatprep.subr.mxu0 %v363
    %588 = vmatpush1.msra.mxu0 %v362
    %589 = vmatprep.subr.mxu0 %v366
    %590 = vmatpush1.msra.mxu0 %v365
    %591 = vmatprep.subr.mxu0 %v369
    %592 = vmatpush1.msra.mxu0 %v368
    %593 = vmatprep.subr.mxu0 %v372
    %594 = vmatpush1.msra.mxu0 %v371
    %595 = vmatprep.subr.mxu0 %v375
    %596 = vmatpush1.msra.mxu0 %v374
    %597 = vmatprep.subr.mxu0 %v378
    %598 = vmatpush1.msra.mxu0 %v377
    %599 = vmatprep.subr.mxu0 %v381
    %600 = vmatpush1.msra.mxu0 %v380
    %601 = vmatprep.subr.mxu0 %v384
    %602 = vmatpush1.msra.mxu0 %v383
    %603 = vmatprep.subr.mxu0 0.0
    %604 = vmatpush1.msra.mxu0 0.0
    %605 = vmatprep.subr.mxu0 0.0
    %606 = vmatpush1.msra.mxu0 0.0
    %607 = vmatprep.subr.mxu0 0.0
    %608 = vmatpush1.msra.mxu0 0.0
    %609 = vmatprep.subr.mxu0 0.0
    %610 = vmatpush1.msra.mxu0 0.0
    %611 = vmatprep.subr.mxu0 0.0
    %612 = vmatpush1.msra.mxu0 0.0
    %613 = vmatprep.subr.mxu0 0.0
    %614 = vmatpush1.msra.mxu0 0.0
    %615 = vmatprep.subr.mxu0 0.0
    %616 = vmatpush1.msra.mxu0 0.0
    %617 = vmatprep.subr.mxu0 0.0
    %618 = vmatpush1.msra.mxu0 0.0
    %619 = vmatprep.subr.mxu0 0.0
    %620 = vmatpush1.msra.mxu0 0.0
    %621 = vmatprep.subr.mxu0 0.0
    %622 = vmatpush1.msra.mxu0 0.0
    %623 = vmatprep.subr.mxu0 0.0
    %624 = vmatpush1.msra.mxu0 0.0
    %625 = vmatprep.subr.mxu0 0.0
    %626 = vmatpush1.msra.mxu0 0.0
    %627 = vmatprep.subr.mxu0 0.0
    %628 = vmatpush1.msra.mxu0 0.0
    %629 = vmatprep.subr.mxu0 0.0
    %630 = vmatpush1.msra.mxu0 0.0
    %631 = vmatprep.subr.mxu0 0.0
    %632 = vmatpush1.msra.mxu0 0.0
    %633 = vmatprep.subr.mxu0 0.0
    %634 = vmatpush1.msra.mxu0 0.0
    %635 = vmatprep.mubr.f32.mxu0 0.0
    %636 = vmatmul.mubr.f32.gmra.mrb[0].mxu0 %v567
    %v637 = vpop.f32.mrb[0].mxu0
    %v638 = vadd.f32 %v391, %v637
    %v639 = vpop.f32.mrb[0].mxu0
    %v640 = vadd.f32 %v395, %v639
    %641 = vdwg.mxu0
    %642 = vmatprep.subr.mxu0 0.0
    %643 = vmatpush1.msra.mxu0 %v340
    %644 = vmatprep.subr.mxu0 0.0
    %645 = vmatpush1.msra.mxu0 %v343
    %646 = vmatprep.subr.mxu0 0.0
    %647 = vmatpush1.msra.mxu0 %v346
    %648 = vmatprep.subr.mxu0 0.0
    %649 = vmatpush1.msra.mxu0 %v349
    %650 = vmatprep.subr.mxu0 0.0
    %651 = vmatpush1.msra.mxu0 %v352
    %652 = vmatprep.subr.mxu0 0.0
    %653 = vmatpush1.msra.mxu0 %v355
    %654 = vmatprep.subr.mxu0 0.0
    %655 = vmatpush1.msra.mxu0 %v358
    %656 = vmatprep.subr.mxu0 0.0
    %657 = vmatpush1.msra.mxu0 %v361
    %658 = vmatprep.subr.mxu0 0.0
    %659 = vmatpush1.msra.mxu0 %v364
    %660 = vmatprep.subr.mxu0 0.0
    %661 = vmatpush1.msra.mxu0 %v367
    %662 = vmatprep.subr.mxu0 0.0
    %663 = vmatpush1.msra.mxu0 %v370
    %664 = vmatprep.subr.mxu0 0.0
    %665 = vmatpush1.msra.mxu0 %v373
    %666 = vmatprep.subr.mxu0 0.0
    %667 = vmatpush1.msra.mxu0 %v376
    %668 = vmatprep.subr.mxu0 0.0
    %669 = vmatpush1.msra.mxu0 %v379
    %670 = vmatprep.subr.mxu0 0.0
    %671 = vmatpush1.msra.mxu0 %v382
    %672 = vmatprep.subr.mxu0 0.0
    %673 = vmatpush1.msra.mxu0 %v385
    %674 = vmatprep.subr.mxu0 0.0
    %675 = vmatpush1.msra.mxu0 0.0
    %676 = vmatprep.subr.mxu0 0.0
    %677 = vmatpush1.msra.mxu0 0.0
    %678 = vmatprep.subr.mxu0 0.0
    %679 = vmatpush1.msra.mxu0 0.0
    %680 = vmatprep.subr.mxu0 0.0
    %681 = vmatpush1.msra.mxu0 0.0
    %682 = vmatprep.subr.mxu0 0.0
    %683 = vmatpush1.msra.mxu0 0.0
    %684 = vmatprep.subr.mxu0 0.0
    %685 = vmatpush1.msra.mxu0 0.0
    %686 = vmatprep.subr.mxu0 0.0
    %687 = vmatpush1.msra.mxu0 0.0
    %688 = vmatprep.subr.mxu0 0.0
    %689 = vmatpush1.msra.mxu0 0.0
    %690 = vmatprep.subr.mxu0 0.0
    %691 = vmatpush1.msra.mxu0 0.0
    %692 = vmatprep.subr.mxu0 0.0
    %693 = vmatpush1.msra.mxu0 0.0
    %694 = vmatprep.subr.mxu0 0.0
    %695 = vmatpush1.msra.mxu0 0.0
    %696 = vmatprep.subr.mxu0 0.0
    %697 = vmatpush1.msra.mxu0 0.0
    %698 = vmatprep.subr.mxu0 0.0
    %699 = vmatpush1.msra.mxu0 0.0
    %700 = vmatprep.subr.mxu0 0.0
    %701 = vmatpush1.msra.mxu0 0.0
    %702 = vmatprep.subr.mxu0 0.0
    %703 = vmatpush1.msra.mxu0 0.0
    %704 = vmatprep.subr.mxu0 0.0
    %705 = vmatpush1.msra.mxu0 0.0
    %706 = vmatprep.mubr.f32.mxu0 0.0
    %707 = vmatmul.mubr.f32.gmra.mrb[0].mxu0 %v567
    %v708 = vpop.f32.mrb[0].mxu0
    %v709 = vadd.f32 %v399, %v708
    %v710 = vpop.f32.mrb[0].mxu0
    %711 = vdwg.mxu0
    %v712 = vadd.f32 %v568, %v638
    %v713 = vxor.u32 %v712, 2147483648
    %v714 = vmul.f32 %v713, 1.442695
    %v715 = vpow.pop %v714
    %v716 = vadd.f32 %v715, 1.0
    %v717 = vrcp.pop %v716
    %v718 = vmul.f32 1.0, %v717
    %v719 = vadd.f32 %v569, %v640
    %v720 = vxor.u32 %v719, 2147483648
    %v721 = vmul.f32 %v720, 1.442695
    %v722 = vpow.pop %v721
    %v723 = vadd.f32 %v722, 1.0
    %v724 = vrcp.pop %v723
    %v725 = vmul.f32 1.0, %v724
    %v726 = vmul.f32 %v718, %v709
    %v727 = vadd.f32 %v570, %v726
    %v728 = vtanh.pop %v727
    %v729 = vsub.f32 1.0, %v725
    %v730 = vmul.f32 %v729, %v728
    %v731 = vmul.f32 %v725, %v567
    %v732 = vadd.f32 %v730, %v731
    %v733 = vld [vmem:[#allocation2 + $0x30] sm:$0xff]
    %v734 = vld [vmem:[#allocation2 + $0x38] sm:$0xff]
    %v735 = vld [vmem:[#allocation2 + $0x40] sm:$0xff]
    %736 = vmatprep.subr.mxu0 %v339
    %737 = vmatpush1.msra.mxu0 %v338
    %738 = vmatprep.subr.mxu0 %v342
    %739 = vmatpush1.msra.mxu0 %v341
    %740 = vmatprep.subr.mxu0 %v345
    %741 = vmatpush1.msra.mxu0 %v344
    %742 = vmatprep.subr.mxu0 %v348
    %743 = vmatpush1.msra.mxu0 %v347
    %744 = vmatprep.subr.mxu0 %v351
    %745 = vmatpush1.msra.mxu0 %v350
    %746 = vmatprep.subr.mxu0 %v354
    %747 = vmatpush1.msra.mxu0 %v353
    %748 = vmatprep.subr.mxu0 %v357
    %749 = vmatpush1.msra.mxu0 %v356
    %750 = vmatprep.subr.mxu0 %v360
    %751 = vmatpush1.msra.mxu0 %v359
    %752 = vmatprep.subr.mxu0 %v363
    %753 = vmatpush1.msra.mxu0 %v362
    %754 = vmatprep.subr.mxu0 %v366
    %755 = vmatpush1.msra.mxu0 %v365
    %756 = vmatprep.subr.mxu0 %v369
    %757 = vmatpush1.msra.mxu0 %v368
    %758 = vmatprep.subr.mxu0 %v372
    %759 = vmatpush1.msra.mxu0 %v371
    %760 = vmatprep.subr.mxu0 %v375
    %761 = vmatpush1.msra.mxu0 %v374
    %762 = vmatprep.subr.mxu0 %v378
    %763 = vmatpush1.msra.mxu0 %v377
    %764 = vmatprep.subr.mxu0 %v381
    %765 = vmatpush1.msra.mxu0 %v380
    %766 = vmatprep.subr.mxu0 %v384
    %767 = vmatpush1.msra.mxu0 %v383
    %768 = vmatprep.subr.mxu0 0.0
    %769 = vmatpush1.msra.mxu0 0.0
    %770 = vmatprep.subr.mxu0 0.0
    %771 = vmatpush1.msra.mxu0 0.0
    %772 = vmatprep.subr.mxu0 0.0
    %773 = vmatpush1.msra.mxu0 0.0
    %774 = vmatprep.subr.mxu0 0.0
    %775 = vmatpush1.msra.mxu0 0.0
    %776 = vmatprep.subr.mxu0 0.0
    %777 = vmatpush1.msra.mxu0 0.0
    %778 = vmatprep.subr.mxu0 0.0
    %779 = vmatpush1.msra.mxu0 0.0
    %780 = vmatprep.subr.mxu0 0.0
    %781 = vmatpush1.msra.mxu0 0.0
    %782 = vmatprep.subr.mxu0 0.0
    %783 = vmatpush1.msra.mxu0 0.0
    %784 = vmatprep.subr.mxu0 0.0
    %785 = vmatpush1.msra.mxu0 0.0
    %786 = vmatprep.subr.mxu0 0.0
    %787 = vmatpush1.msra.mxu0 0.0
    %788 = vmatprep.subr.mxu0 0.0
    %789 = vmatpush1.msra.mxu0 0.0
    %790 = vmatprep.subr.mxu0 0.0
    %791 = vmatpush1.msra.mxu0 0.0
    %792 = vmatprep.subr.mxu0 0.0
    %793 = vmatpush1.msra.mxu0 0.0
    %794 = vmatprep.subr.mxu0 0.0
    %795 = vmatpush1.msra.mxu0 0.0
    %796 = vmatprep.subr.mxu0 0.0
    %797 = vmatpush1.msra.mxu0 0.0
    %798 = vmatprep.subr.mxu0 0.0
    %799 = vmatpush1.msra.mxu0 0.0
    %800 = vmatprep.mubr.f32.mxu0 0.0
    %801 = vmatmul.mubr.f32.gmra.mrb[0].mxu0 %v732
    %v802 = vpop.f32.mrb[0].mxu0
    %v803 = vadd.f32 %v391, %v802
    %v804 = vpop.f32.mrb[0].mxu0
    %v805 = vadd.f32 %v395, %v804
    %806 = vdwg.mxu0
    %807 = vmatprep.subr.mxu0 0.0
    %808 = vmatpush1.msra.mxu0 %v340
    %809 = vmatprep.subr.mxu0 0.0
    %810 = vmatpush1.msra.mxu0 %v343
    %811 = vmatprep.subr.mxu0 0.0
    %812 = vmatpush1.msra.mxu0 %v346
    %813 = vmatprep.subr.mxu0 0.0
    %814 = vmatpush1.msra.mxu0 %v349
    %815 = vmatprep.subr.mxu0 0.0
    %816 = vmatpush1.msra.mxu0 %v352
    %817 = vmatprep.subr.mxu0 0.0
    %818 = vmatpush1.msra.mxu0 %v355
    %819 = vmatprep.subr.mxu0 0.0
    %820 = vmatpush1.msra.mxu0 %v358
    %821 = vmatprep.subr.mxu0 0.0
    %822 = vmatpush1.msra.mxu0 %v361
    %823 = vmatprep.subr.mxu0 0.0
    %824 = vmatpush1.msra.mxu0 %v364
    %825 = vmatprep.subr.mxu0 0.0
    %826 = vmatpush1.msra.mxu0 %v367
    %827 = vmatprep.subr.mxu0 0.0
    %828 = vmatpush1.msra.mxu0 %v370
    %829 = vmatprep.subr.mxu0 0.0
    %830 = vmatpush1.msra.mxu0 %v373
    %831 = vmatprep.subr.mxu0 0.0
    %832 = vmatpush1.msra.mxu0 %v376
    %833 = vmatprep.subr.mxu0 0.0
    %834 = vmatpush1.msra.mxu0 %v379
    %835 = vmatprep.subr.mxu0 0.0
    %836 = vmatpush1.msra.mxu0 %v382
    %837 = vmatprep.subr.mxu0 0.0
    %838 = vmatpush1.msra.mxu0 %v385
    %839 = vmatprep.subr.mxu0 0.0
    %840 = vmatpush1.msra.mxu0 0.0
    %841 = vmatprep.subr.mxu0 0.0
    %842 = vmatpush1.msra.mxu0 0.0
    %843 = vmatprep.subr.mxu0 0.0
    %844 = vmatpush1.msra.mxu0 0.0
    %845 = vmatprep.subr.mxu0 0.0
    %846 = vmatpush1.msra.mxu0 0.0
    %847 = vmatprep.subr.mxu0 0.0
    %848 = vmatpush1.msra.mxu0 0.0
    %849 = vmatprep.subr.mxu0 0.0
    %850 = vmatpush1.msra.mxu0 0.0
    %851 = vmatprep.subr.mxu0 0.0
    %852 = vmatpush1.msra.mxu0 0.0
    %853 = vmatprep.subr.mxu0 0.0
    %854 = vmatpush1.msra.mxu0 0.0
    %855 = vmatprep.subr.mxu0 0.0
    %856 = vmatpush1.msra.mxu0 0.0
    %857 = vmatprep.subr.mxu0 0.0
    %858 = vmatpush1.msra.mxu0 0.0
    %859 = vmatprep.subr.mxu0 0.0
    %860 = vmatpush1.msra.mxu0 0.0
    %861 = vmatprep.subr.mxu0 0.0
    %862 = vmatpush1.msra.mxu0 0.0
    %863 = vmatprep.subr.mxu0 0.0
    %864 = vmatpush1.msra.mxu0 0.0
    %865 = vmatprep.subr.mxu0 0.0
    %866 = vmatpush1.msra.mxu0 0.0
    %867 = vmatprep.subr.mxu0 0.0
    %868 = vmatpush1.msra.mxu0 0.0
    %869 = vmatprep.subr.mxu0 0.0
    %870 = vmatpush1.msra.mxu0 0.0
    %871 = vmatprep.mubr.f32.mxu0 0.0
    %872 = vmatmul.mubr.f32.gmra.mrb[0].mxu0 %v732
    %v873 = vpop.f32.mrb[0].mxu0
    %v874 = vadd.f32 %v399, %v873
    %v875 = vpop.f32.mrb[0].mxu0
    %876 = vdwg.mxu0
    %v877 = vadd.f32 %v733, %v803
    %v878 = vxor.u32 %v877, 2147483648
    %v879 = vmul.f32 %v878, 1.442695
    %v880 = vpow.pop %v879
    %v881 = vadd.f32 %v880, 1.0
    %v882 = vrcp.pop %v881
    %v883 = vmul.f32 1.0, %v882
    %v884 = vadd.f32 %v734, %v805
    %v885 = vxor.u32 %v884, 2147483648
    %v886 = vmul.f32 %v885, 1.442695
    %v887 = vpow.pop %v886
    %v888 = vadd.f32 %v887, 1.0
    %v889 = vrcp.pop %v888
    %v890 = vmul.f32 1.0, %v889
    %v891 = vmul.f32 %v883, %v874
    %v892 = vadd.f32 %v735, %v891
    %v893 = vtanh.pop %v892
    %v894 = vsub.f32 1.0, %v890
    %v895 = vmul.f32 %v894, %v893
    %v896 = vmul.f32 %v890, %v732
    %v897 = vadd.f32 %v895, %v896
    %v898 = vld [vmem:[#allocation2 + $0x48] sm:$0xff]
    %v899 = vld [vmem:[#allocation2 + $0x50] sm:$0xff]
    %v900 = vld [vmem:[#allocation2 + $0x58] sm:$0xff]
    %901 = vmatprep.subr.mxu0 %v339
    %902 = vmatpush1.msra.mxu0 %v338
    %903 = vmatprep.subr.mxu0 %v342
    %904 = vmatpush1.msra.mxu0 %v341
    %905 = vmatprep.subr.mxu0 %v345
    %906 = vmatpush1.msra.mxu0 %v344
    %907 = vmatprep.subr.mxu0 %v348
    %908 = vmatpush1.msra.mxu0 %v347
    %909 = vmatprep.subr.mxu0 %v351
    %910 = vmatpush1.msra.mxu0 %v350
    %911 = vmatprep.subr.mxu0 %v354
    %912 = vmatpush1.msra.mxu0 %v353
    %913 = vmatprep.subr.mxu0 %v357
    %914 = vmatpush1.msra.mxu0 %v356
    %915 = vmatprep.subr.mxu0 %v360
    %916 = vmatpush1.msra.mxu0 %v359
    %917 = vmatprep.subr.mxu0 %v363
    %918 = vmatpush1.msra.mxu0 %v362
    %919 = vmatprep.subr.mxu0 %v366
    %920 = vmatpush1.msra.mxu0 %v365
    %921 = vmatprep.subr.mxu0 %v369
    %922 = vmatpush1.msra.mxu0 %v368
    %923 = vmatprep.subr.mxu0 %v372
    %924 = vmatpush1.msra.mxu0 %v371
    %925 = vmatprep.subr.mxu0 %v375
    %926 = vmatpush1.msra.mxu0 %v374
    %927 = vmatprep.subr.mxu0 %v378
    %928 = vmatpush1.msra.mxu0 %v377
    %929 = vmatprep.subr.mxu0 %v381
    %930 = vmatpush1.msra.mxu0 %v380
    %931 = vmatprep.subr.mxu0 %v384
    %932 = vmatpush1.msra.mxu0 %v383
    %933 = vmatprep.subr.mxu0 0.0
    %934 = vmatpush1.msra.mxu0 0.0
    %935 = vmatprep.subr.mxu0 0.0
    %936 = vmatpush1.msra.mxu0 0.0
    %937 = vmatprep.subr.mxu0 0.0
    %938 = vmatpush1.msra.mxu0 0.0
    %939 = vmatprep.subr.mxu0 0.0
    %940 = vmatpush1.msra.mxu0 0.0
    %941 = vmatprep.subr.mxu0 0.0
    %942 = vmatpush1.msra.mxu0 0.0
    %943 = vmatprep.subr.mxu0 0.0
    %944 = vmatpush1.msra.mxu0 0.0
    %945 = vmatprep.subr.mxu0 0.0
    %946 = vmatpush1.msra.mxu0 0.0
    %947 = vmatprep.subr.mxu0 0.0
    %948 = vmatpush1.msra.mxu0 0.0
    %949 = vmatprep.subr.mxu0 0.0
    %950 = vmatpush1.msra.mxu0 0.0
    %951 = vmatprep.subr.mxu0 0.0
    %952 = vmatpush1.msra.mxu0 0.0
    %953 = vmatprep.subr.mxu0 0.0
    %954 = vmatpush1.msra.mxu0 0.0
    %955 = vmatprep.subr.mxu0 0.0
    %956 = vmatpush1.msra.mxu0 0.0
    %957 = vmatprep.subr.mxu0 0.0
    %958 = vmatpush1.msra.mxu0 0.0
    %959 = vmatprep.subr.mxu0 0.0
    %960 = vmatpush1.msra.mxu0 0.0
    %961 = vmatprep.subr.mxu0 0.0
    %962 = vmatpush1.msra.mxu0 0.0
    %963 = vmatprep.subr.mxu0 0.0
    %964 = vmatpush1.msra.mxu0 0.0
    %965 = vmatprep.mubr.f32.mxu0 0.0
    %966 = vmatmul.mubr.f32.gmra.mrb[0].mxu0 %v897
    %v967 = vpop.f32.mrb[0].mxu0
    %v968 = vadd.f32 %v391, %v967
    %v969 = vpop.f32.mrb[0].mxu0
    %v970 = vadd.f32 %v395, %v969
    %971 = vdwg.mxu0
    %972 = vmatprep.subr.mxu0 0.0
    %973 = vmatpush1.msra.mxu0 %v340
    %974 = vmatprep.subr.mxu0 0.0
    %975 = vmatpush1.msra.mxu0 %v343
    %976 = vmatprep.subr.mxu0 0.0
    %977 = vmatpush1.msra.mxu0 %v346
    %978 = vmatprep.subr.mxu0 0.0
    %979 = vmatpush1.msra.mxu0 %v349
    %980 = vmatprep.subr.mxu0 0.0
    %981 = vmatpush1.msra.mxu0 %v352
    %982 = vmatprep.subr.mxu0 0.0
    %983 = vmatpush1.msra.mxu0 %v355
    %984 = vmatprep.subr.mxu0 0.0
    %985 = vmatpush1.msra.mxu0 %v358
    %986 = vmatprep.subr.mxu0 0.0
    %987 = vmatpush1.msra.mxu0 %v361
    %988 = vmatprep.subr.mxu0 0.0
    %989 = vmatpush1.msra.mxu0 %v364
    %990 = vmatprep.subr.mxu0 0.0
    %991 = vmatpush1.msra.mxu0 %v367
    %992 = vmatprep.subr.mxu0 0.0
    %993 = vmatpush1.msra.mxu0 %v370
    %994 = vmatprep.subr.mxu0 0.0
    %995 = vmatpush1.msra.mxu0 %v373
    %996 = vmatprep.subr.mxu0 0.0
    %997 = vmatpush1.msra.mxu0 %v376
    %998 = vmatprep.subr.mxu0 0.0
    %999 = vmatpush1.msra.mxu0 %v379
    %1000 = vmatprep.subr.mxu0 0.0
    %1001 = vmatpush1.msra.mxu0 %v382
    %1002 = vmatprep.subr.mxu0 0.0
    %1003 = vmatpush1.msra.mxu0 %v385
    %1004 = vmatprep.subr.mxu0 0.0
    %1005 = vmatpush1.msra.mxu0 0.0
    %1006 = vmatprep.subr.mxu0 0.0
    %1007 = vmatpush1.msra.mxu0 0.0
    %1008 = vmatprep.subr.mxu0 0.0
    %1009 = vmatpush1.msra.mxu0 0.0
    %1010 = vmatprep.subr.mxu0 0.0
    %1011 = vmatpush1.msra.mxu0 0.0
    %1012 = vmatprep.subr.mxu0 0.0
    %1013 = vmatpush1.msra.mxu0 0.0
    %1014 = vmatprep.subr.mxu0 0.0
    %1015 = vmatpush1.msra.mxu0 0.0
    %1016 = vmatprep.subr.mxu0 0.0
    %1017 = vmatpush1.msra.mxu0 0.0
    %1018 = vmatprep.subr.mxu0 0.0
    %1019 = vmatpush1.msra.mxu0 0.0
    %1020 = vmatprep.subr.mxu0 0.0
    %1021 = vmatpush1.msra.mxu0 0.0
    %1022 = vmatprep.subr.mxu0 0.0
    %1023 = vmatpush1.msra.mxu0 0.0
    %1024 = vmatprep.subr.mxu0 0.0
    %1025 = vmatpush1.msra.mxu0 0.0
    %1026 = vmatprep.subr.mxu0 0.0
    %1027 = vmatpush1.msra.mxu0 0.0
    %1028 = vmatprep.subr.mxu0 0.0
    %1029 = vmatpush1.msra.mxu0 0.0
    %1030 = vmatprep.subr.mxu0 0.0
    %1031 = vmatpush1.msra.mxu0 0.0
    %1032 = vmatprep.subr.mxu0 0.0
    %1033 = vmatpush1.msra.mxu0 0.0
    %1034 = vmatprep.subr.mxu0 0.0
    %1035 = vmatpush1.msra.mxu0 0.0
    %1036 = vmatprep.mubr.f32.mxu0 0.0
    %1037 = vmatmul.mubr.f32.gmra.mrb[0].mxu0 %v897
    %v1038 = vpop.f32.mrb[0].mxu0
    %v1039 = vadd.f32 %v399, %v1038
    %v1040 = vpop.f32.mrb[0].mxu0
    %1041 = vdwg.mxu0
    %v1042 = vadd.f32 %v898, %v968
    %v1043 = vxor.u32 %v1042, 2147483648
    %v1044 = vmul.f32 %v1043, 1.442695
    %v1045 = vpow.pop %v1044
    %v1046 = vadd.f32 %v1045, 1.0
    %v1047 = vrcp.pop %v1046
    %v1048 = vmul.f32 1.0, %v1047
    %v1049 = vadd.f32 %v899, %v970
    %v1050 = vxor.u32 %v1049, 2147483648
    %v1051 = vmul.f32 %v1050, 1.442695
    %v1052 = vpow.pop %v1051
    %v1053 = vadd.f32 %v1052, 1.0
    %v1054 = vrcp.pop %v1053
    %v1055 = vmul.f32 1.0, %v1054
    %v1056 = vmul.f32 %v1048, %v1039
    %v1057 = vadd.f32 %v900, %v1056
    %v1058 = vtanh.pop %v1057
    %v1059 = vsub.f32 1.0, %v1055
    %v1060 = vmul.f32 %v1059, %v1058
    %v1061 = vmul.f32 %v1055, %v897
    %v1062 = vadd.f32 %v1060, %v1061
    %v1063 = vld [vmem:[#allocation2 + $0x60] sm:$0xff]
    %v1064 = vld [vmem:[#allocation2 + $0x68] sm:$0xff]
    %v1065 = vld [vmem:[#allocation2 + $0x70] sm:$0xff]
    %1066 = vmatprep.subr.mxu0 %v339
    %1067 = vmatpush1.msra.mxu0 %v338
    %1068 = vmatprep.subr.mxu0 %v342
    %1069 = vmatpush1.msra.mxu0 %v341
    %1070 = vmatprep.subr.mxu0 %v345
    %1071 = vmatpush1.msra.mxu0 %v344
    %1072 = vmatprep.subr.mxu0 %v348
    %1073 = vmatpush1.msra.mxu0 %v347
    %1074 = vmatprep.subr.mxu0 %v351
    %1075 = vmatpush1.msra.mxu0 %v350
    %1076 = vmatprep.subr.mxu0 %v354
    %1077 = vmatpush1.msra.mxu0 %v353
    %1078 = vmatprep.subr.mxu0 %v357
    %1079 = vmatpush1.msra.mxu0 %v356
    %1080 = vmatprep.subr.mxu0 %v360
    %1081 = vmatpush1.msra.mxu0 %v359
    %1082 = vmatprep.subr.mxu0 %v363
    %1083 = vmatpush1.msra.mxu0 %v362
    %1084 = vmatprep.subr.mxu0 %v366
    %1085 = vmatpush1.msra.mxu0 %v365
    %1086 = vmatprep.subr.mxu0 %v369
    %1087 = vmatpush1.msra.mxu0 %v368
    %1088 = vmatprep.subr.mxu0 %v372
    %1089 = vmatpush1.msra.mxu0 %v371
    %1090 = vmatprep.subr.mxu0 %v375
    %1091 = vmatpush1.msra.mxu0 %v374
    %1092 = vmatprep.subr.mxu0 %v378
    %1093 = vmatpush1.msra.mxu0 %v377
    %1094 = vmatprep.subr.mxu0 %v381
    %1095 = vmatpush1.msra.mxu0 %v380
    %1096 = vmatprep.subr.mxu0 %v384
    %1097 = vmatpush1.msra.mxu0 %v383
    %1098 = vmatprep.subr.mxu0 0.0
    %1099 = vmatpush1.msra.mxu0 0.0
    %1100 = vmatprep.subr.mxu0 0.0
    %1101 = vmatpush1.msra.mxu0 0.0
    %1102 = vmatprep.subr.mxu0 0.0
    %1103 = vmatpush1.msra.mxu0 0.0
    %1104 = vmatprep.subr.mxu0 0.0
    %1105 = vmatpush1.msra.mxu0 0.0
    %1106 = vmatprep.subr.mxu0 0.0
    %1107 = vmatpush1.msra.mxu0 0.0
    %1108 = vmatprep.subr.mxu0 0.0
    %1109 = vmatpush1.msra.mxu0 0.0
    %1110 = vmatprep.subr.mxu0 0.0
    %1111 = vmatpush1.msra.mxu0 0.0
    %1112 = vmatprep.subr.mxu0 0.0
    %1113 = vmatpush1.msra.mxu0 0.0
    %1114 = vmatprep.subr.mxu0 0.0
    %1115 = vmatpush1.msra.mxu0 0.0
    %1116 = vmatprep.subr.mxu0 0.0
    %1117 = vmatpush1.msra.mxu0 0.0
    %1118 = vmatprep.subr.mxu0 0.0
    %1119 = vmatpush1.msra.mxu0 0.0
    %1120 = vmatprep.subr.mxu0 0.0
    %1121 = vmatpush1.msra.mxu0 0.0
    %1122 = vmatprep.subr.mxu0 0.0
    %1123 = vmatpush1.msra.mxu0 0.0
    %1124 = vmatprep.subr.mxu0 0.0
    %1125 = vmatpush1.msra.mxu0 0.0
    %1126 = vmatprep.subr.mxu0 0.0
    %1127 = vmatpush1.msra.mxu0 0.0
    %1128 = vmatprep.subr.mxu0 0.0
    %1129 = vmatpush1.msra.mxu0 0.0
    %1130 = vmatprep.mubr.f32.mxu0 0.0
    %1131 = vmatmul.mubr.f32.gmra.mrb[0].mxu0 %v1062
    %v1132 = vpop.f32.mrb[0].mxu0
    %v1133 = vadd.f32 %v391, %v1132
    %v1134 = vpop.f32.mrb[0].mxu0
    %v1135 = vadd.f32 %v395, %v1134
    %1136 = vdwg.mxu0
    %1137 = vmatprep.subr.mxu0 0.0
    %1138 = vmatpush1.msra.mxu0 %v340
    %1139 = vmatprep.subr.mxu0 0.0
    %1140 = vmatpush1.msra.mxu0 %v343
    %1141 = vmatprep.subr.mxu0 0.0
    %1142 = vmatpush1.msra.mxu0 %v346
    %1143 = vmatprep.subr.mxu0 0.0
    %1144 = vmatpush1.msra.mxu0 %v349
    %1145 = vmatprep.subr.mxu0 0.0
    %1146 = vmatpush1.msra.mxu0 %v352
    %1147 = vmatprep.subr.mxu0 0.0
    %1148 = vmatpush1.msra.mxu0 %v355
    %1149 = vmatprep.subr.mxu0 0.0
    %1150 = vmatpush1.msra.mxu0 %v358
    %1151 = vmatprep.subr.mxu0 0.0
    %1152 = vmatpush1.msra.mxu0 %v361
    %1153 = vmatprep.subr.mxu0 0.0
    %1154 = vmatpush1.msra.mxu0 %v364
    %1155 = vmatprep.subr.mxu0 0.0
    %1156 = vmatpush1.msra.mxu0 %v367
    %1157 = vmatprep.subr.mxu0 0.0
    %1158 = vmatpush1.msra.mxu0 %v370
    %1159 = vmatprep.subr.mxu0 0.0
    %1160 = vmatpush1.msra.mxu0 %v373
    %1161 = vmatprep.subr.mxu0 0.0
    %1162 = vmatpush1.msra.mxu0 %v376
    %1163 = vmatprep.subr.mxu0 0.0
    %1164 = vmatpush1.msra.mxu0 %v379
    %1165 = vmatprep.subr.mxu0 0.0
    %1166 = vmatpush1.msra.mxu0 %v382
    %1167 = vmatprep.subr.mxu0 0.0
    %1168 = vmatpush1.msra.mxu0 %v385
    %1169 = vmatprep.subr.mxu0 0.0
    %1170 = vmatpush1.msra.mxu0 0.0
    %1171 = vmatprep.subr.mxu0 0.0
    %1172 = vmatpush1.msra.mxu0 0.0
    %1173 = vmatprep.subr.mxu0 0.0
    %1174 = vmatpush1.msra.mxu0 0.0
    %1175 = vmatprep.subr.mxu0 0.0
    %1176 = vmatpush1.msra.mxu0 0.0
    %1177 = vmatprep.subr.mxu0 0.0
    %1178 = vmatpush1.msra.mxu0 0.0
    %1179 = vmatprep.subr.mxu0 0.0
    %1180 = vmatpush1.msra.mxu0 0.0
    %1181 = vmatprep.subr.mxu0 0.0
    %1182 = vmatpush1.msra.mxu0 0.0
    %1183 = vmatprep.subr.mxu0 0.0
    %1184 = vmatpush1.msra.mxu0 0.0
    %1185 = vmatprep.subr.mxu0 0.0
    %1186 = vmatpush1.msra.mxu0 0.0
    %1187 = vmatprep.subr.mxu0 0.0
    %1188 = vmatpush1.msra.mxu0 0.0
    %1189 = vmatprep.subr.mxu0 0.0
    %1190 = vmatpush1.msra.mxu0 0.0
    %1191 = vmatprep.subr.mxu0 0.0
    %1192 = vmatpush1.msra.mxu0 0.0
    %1193 = vmatprep.subr.mxu0 0.0
    %1194 = vmatpush1.msra.mxu0 0.0
    %1195 = vmatprep.subr.mxu0 0.0
    %1196 = vmatpush1.msra.mxu0 0.0
    %1197 = vmatprep.subr.mxu0 0.0
    %1198 = vmatpush1.msra.mxu0 0.0
    %1199 = vmatprep.subr.mxu0 0.0
    %1200 = vmatpush1.msra.mxu0 0.0
    %1201 = vmatprep.mubr.f32.mxu0 0.0
    %1202 = vmatmul.mubr.f32.gmra.mrb[0].mxu0 %v1062
    %v1203 = vpop.f32.mrb[0].mxu0
    %v1204 = vadd.f32 %v399, %v1203
    %v1205 = vpop.f32.mrb[0].mxu0
    %1206 = vdwg.mxu0
    %v1207 = vadd.f32 %v1063, %v1133
    %v1208 = vxor.u32 %v1207, 2147483648
    %v1209 = vmul.f32 %v1208, 1.442695
    %v1210 = vpow.pop %v1209
    %v1211 = vadd.f32 %v1210, 1.0
    %v1212 = vrcp.pop %v1211
    %v1213 = vmul.f32 1.0, %v1212
    %v1214 = vadd.f32 %v1064, %v1135
    %v1215 = vxor.u32 %v1214, 2147483648
    %v1216 = vmul.f32 %v1215, 1.442695
    %v1217 = vpow.pop %v1216
    %v1218 = vadd.f32 %v1217, 1.0
    %v1219 = vrcp.pop %v1218
    %v1220 = vmul.f32 1.0, %v1219
    %v1221 = vmul.f32 %v1213, %v1204
    %v1222 = vadd.f32 %v1065, %v1221
    %v1223 = vtanh.pop %v1222
    %v1224 = vsub.f32 1.0, %v1220
    %v1225 = vmul.f32 %v1224, %v1223
    %v1226 = vmul.f32 %v1220, %v1062
    %v1227 = vadd.f32 %v1225, %v1226
    %v1228 = vld [vmem:[#allocation2 + $0x78] sm:$0xff]
    %v1229 = vld [vmem:[#allocation2 + $0x80] sm:$0xff]
    %v1230 = vld [vmem:[#allocation2 + $0x88] sm:$0xff]
    %1231 = vmatprep.subr.mxu0 %v339
    %1232 = vmatpush1.msra.mxu0 %v338
    %1233 = vmatprep.subr.mxu0 %v342
    %1234 = vmatpush1.msra.mxu0 %v341
    %1235 = vmatprep.subr.mxu0 %v345
    %1236 = vmatpush1.msra.mxu0 %v344
    %1237 = vmatprep.subr.mxu0 %v348
    %1238 = vmatpush1.msra.mxu0 %v347
    %1239 = vmatprep.subr.mxu0 %v351
    %1240 = vmatpush1.msra.mxu0 %v350
    %1241 = vmatprep.subr.mxu0 %v354
    %1242 = vmatpush1.msra.mxu0 %v353
    %1243 = vmatprep.subr.mxu0 %v357
    %1244 = vmatpush1.msra.mxu0 %v356
    %1245 = vmatprep.subr.mxu0 %v360
    %1246 = vmatpush1.msra.mxu0 %v359
    %1247 = vmatprep.subr.mxu0 %v363
    %1248 = vmatpush1.msra.mxu0 %v362
    %1249 = vmatprep.subr.mxu0 %v366
    %1250 = vmatpush1.msra.mxu0 %v365
    %1251 = vmatprep.subr.mxu0 %v369
    %1252 = vmatpush1.msra.mxu0 %v368
    %1253 = vmatprep.subr.mxu0 %v372
    %1254 = vmatpush1.msra.mxu0 %v371
    %1255 = vmatprep.subr.mxu0 %v375
    %1256 = vmatpush1.msra.mxu0 %v374
    %1257 = vmatprep.subr.mxu0 %v378
    %1258 = vmatpush1.msra.mxu0 %v377
    %1259 = vmatprep.subr.mxu0 %v381
    %1260 = vmatpush1.msra.mxu0 %v380
    %1261 = vmatprep.subr.mxu0 %v384
    %1262 = vmatpush1.msra.mxu0 %v383
    %1263 = vmatprep.subr.mxu0 0.0
    %1264 = vmatpush1.msra.mxu0 0.0
    %1265 = vmatprep.subr.mxu0 0.0
    %1266 = vmatpush1.msra.mxu0 0.0
    %1267 = vmatprep.subr.mxu0 0.0
    %1268 = vmatpush1.msra.mxu0 0.0
    %1269 = vmatprep.subr.mxu0 0.0
    %1270 = vmatpush1.msra.mxu0 0.0
    %1271 = vmatprep.subr.mxu0 0.0
    %1272 = vmatpush1.msra.mxu0 0.0
    %1273 = vmatprep.subr.mxu0 0.0
    %1274 = vmatpush1.msra.mxu0 0.0
    %1275 = vmatprep.subr.mxu0 0.0
    %1276 = vmatpush1.msra.mxu0 0.0
    %1277 = vmatprep.subr.mxu0 0.0
    %1278 = vmatpush1.msra.mxu0 0.0
    %1279 = vmatprep.subr.mxu0 0.0
    %1280 = vmatpush1.msra.mxu0 0.0
    %1281 = vmatprep.subr.mxu0 0.0
    %1282 = vmatpush1.msra.mxu0 0.0
    %1283 = vmatprep.subr.mxu0 0.0
    %1284 = vmatpush1.msra.mxu0 0.0
    %1285 = vmatprep.subr.mxu0 0.0
    %1286 = vmatpush1.msra.mxu0 0.0
    %1287 = vmatprep.subr.mxu0 0.0
    %1288 = vmatpush1.msra.mxu0 0.0
    %1289 = vmatprep.subr.mxu0 0.0
    %1290 = vmatpush1.msra.mxu0 0.0
    %1291 = vmatprep.subr.mxu0 0.0
    %1292 = vmatpush1.msra.mxu0 0.0
    %1293 = vmatprep.subr.mxu0 0.0
    %1294 = vmatpush1.msra.mxu0 0.0
    %1295 = vmatprep.mubr.f32.mxu0 0.0
    %1296 = vmatmul.mubr.f32.gmra.mrb[0].mxu0 %v1227
    %v1297 = vpop.f32.mrb[0].mxu0
    %v1298 = vadd.f32 %v391, %v1297
    %v1299 = vpop.f32.mrb[0].mxu0
    %v1300 = vadd.f32 %v395, %v1299
    %1301 = vdwg.mxu0
    %1302 = vmatprep.subr.mxu0 0.0
    %1303 = vmatpush1.msra.mxu0 %v340
    %1304 = vmatprep.subr.mxu0 0.0
    %1305 = vmatpush1.msra.mxu0 %v343
    %1306 = vmatprep.subr.mxu0 0.0
    %1307 = vmatpush1.msra.mxu0 %v346
    %1308 = vmatprep.subr.mxu0 0.0
    %1309 = vmatpush1.msra.mxu0 %v349
    %1310 = vmatprep.subr.mxu0 0.0
    %1311 = vmatpush1.msra.mxu0 %v352
    %1312 = vmatprep.subr.mxu0 0.0
    %1313 = vmatpush1.msra.mxu0 %v355
    %1314 = vmatprep.subr.mxu0 0.0
    %1315 = vmatpush1.msra.mxu0 %v358
    %1316 = vmatprep.subr.mxu0 0.0
    %1317 = vmatpush1.msra.mxu0 %v361
    %1318 = vmatprep.subr.mxu0 0.0
    %1319 = vmatpush1.msra.mxu0 %v364
    %1320 = vmatprep.subr.mxu0 0.0
    %1321 = vmatpush1.msra.mxu0 %v367
    %1322 = vmatprep.subr.mxu0 0.0
    %1323 = vmatpush1.msra.mxu0 %v370
    %1324 = vmatprep.subr.mxu0 0.0
    %1325 = vmatpush1.msra.mxu0 %v373
    %1326 = vmatprep.subr.mxu0 0.0
    %1327 = vmatpush1.msra.mxu0 %v376
    %1328 = vmatprep.subr.mxu0 0.0
    %1329 = vmatpush1.msra.mxu0 %v379
    %1330 = vmatprep.subr.mxu0 0.0
    %1331 = vmatpush1.msra.mxu0 %v382
    %1332 = vmatprep.subr.mxu0 0.0
    %1333 = vmatpush1.msra.mxu0 %v385
    %1334 = vmatprep.subr.mxu0 0.0
    %1335 = vmatpush1.msra.mxu0 0.0
    %1336 = vmatprep.subr.mxu0 0.0
    %1337 = vmatpush1.msra.mxu0 0.0
    %1338 = vmatprep.subr.mxu0 0.0
    %1339 = vmatpush1.msra.mxu0 0.0
    %1340 = vmatprep.subr.mxu0 0.0
    %1341 = vmatpush1.msra.mxu0 0.0
    %1342 = vmatprep.subr.mxu0 0.0
    %1343 = vmatpush1.msra.mxu0 0.0
    %1344 = vmatprep.subr.mxu0 0.0
    %1345 = vmatpush1.msra.mxu0 0.0
    %1346 = vmatprep.subr.mxu0 0.0
    %1347 = vmatpush1.msra.mxu0 0.0
    %1348 = vmatprep.subr.mxu0 0.0
    %1349 = vmatpush1.msra.mxu0 0.0
    %1350 = vmatprep.subr.mxu0 0.0
    %1351 = vmatpush1.msra.mxu0 0.0
    %1352 = vmatprep.subr.mxu0 0.0
    %1353 = vmatpush1.msra.mxu0 0.0
    %1354 = vmatprep.subr.mxu0 0.0
    %1355 = vmatpush1.msra.mxu0 0.0
    %1356 = vmatprep.subr.mxu0 0.0
    %1357 = vmatpush1.msra.mxu0 0.0
    %1358 = vmatprep.subr.mxu0 0.0
    %1359 = vmatpush1.msra.mxu0 0.0
    %1360 = vmatprep.subr.mxu0 0.0
    %1361 = vmatpush1.msra.mxu0 0.0
    %1362 = vmatprep.subr.mxu0 0.0
    %1363 = vmatpush1.msra.mxu0 0.0
    %1364 = vmatprep.subr.mxu0 0.0
    %1365 = vmatpush1.msra.mxu0 0.0
    %1366 = vmatprep.mubr.f32.mxu0 0.0
    %1367 = vmatmul.mubr.f32.gmra.mrb[0].mxu0 %v1227
    %v1368 = vpop.f32.mrb[0].mxu0
    %v1369 = vadd.f32 %v399, %v1368
    %v1370 = vpop.f32.mrb[0].mxu0
    %1371 = vdwg.mxu0
    %v1372 = vadd.f32 %v1228, %v1298
    %v1373 = vxor.u32 %v1372, 2147483648
    %v1374 = vmul.f32 %v1373, 1.442695
    %v1375 = vpow.pop %v1374
    %v1376 = vadd.f32 %v1375, 1.0
    %v1377 = vrcp.pop %v1376
    %v1378 = vmul.f32 1.0, %v1377
    %v1379 = vadd.f32 %v1229, %v1300
    %v1380 = vxor.u32 %v1379, 2147483648
    %v1381 = vmul.f32 %v1380, 1.442695
    %v1382 = vpow.pop %v1381
    %v1383 = vadd.f32 %v1382, 1.0
    %v1384 = vrcp.pop %v1383
    %v1385 = vmul.f32 1.0, %v1384
    %v1386 = vmul.f32 %v1378, %v1369
    %v1387 = vadd.f32 %v1230, %v1386
    %v1388 = vtanh.pop %v1387
    %v1389 = vsub.f32 1.0, %v1385
    %v1390 = vmul.f32 %v1389, %v1388
    %v1391 = vmul.f32 %v1385, %v1227
    %v1392 = vadd.f32 %v1390, %v1391
    %v1393 = vld [vmem:[#allocation2 + $0x90] sm:$0xff]
    %v1394 = vld [vmem:[#allocation2 + $0x98] sm:$0xff]
    %v1395 = vld [vmem:[#allocation2 + $0xa0] sm:$0xff]
    %1396 = vmatprep.subr.mxu0 %v339
    %1397 = vmatpush1.msra.mxu0 %v338
    %1398 = vmatprep.subr.mxu0 %v342
    %1399 = vmatpush1.msra.mxu0 %v341
    %1400 = vmatprep.subr.mxu0 %v345
    %1401 = vmatpush1.msra.mxu0 %v344
    %1402 = vmatprep.subr.mxu0 %v348
    %1403 = vmatpush1.msra.mxu0 %v347
    %1404 = vmatprep.subr.mxu0 %v351
    %1405 = vmatpush1.msra.mxu0 %v350
    %1406 = vmatprep.subr.mxu0 %v354
    %1407 = vmatpush1.msra.mxu0 %v353
    %1408 = vmatprep.subr.mxu0 %v357
    %1409 = vmatpush1.msra.mxu0 %v356
    %1410 = vmatprep.subr.mxu0 %v360
    %1411 = vmatpush1.msra.mxu0 %v359
    %1412 = vmatprep.subr.mxu0 %v363
    %1413 = vmatpush1.msra.mxu0 %v362
    %1414 = vmatprep.subr.mxu0 %v366
    %1415 = vmatpush1.msra.mxu0 %v365
    %1416 = vmatprep.subr.mxu0 %v369
    %1417 = vmatpush1.msra.mxu0 %v368
    %1418 = vmatprep.subr.mxu0 %v372
    %1419 = vmatpush1.msra.mxu0 %v371
    %1420 = vmatprep.subr.mxu0 %v375
    %1421 = vmatpush1.msra.mxu0 %v374
    %1422 = vmatprep.subr.mxu0 %v378
    %1423 = vmatpush1.msra.mxu0 %v377
    %1424 = vmatprep.subr.mxu0 %v381
    %1425 = vmatpush1.msra.mxu0 %v380
    %1426 = vmatprep.subr.mxu0 %v384
    %1427 = vmatpush1.msra.mxu0 %v383
    %1428 = vmatprep.subr.mxu0 0.0
    %1429 = vmatpush1.msra.mxu0 0.0
    %1430 = vmatprep.subr.mxu0 0.0
    %1431 = vmatpush1.msra.mxu0 0.0
    %1432 = vmatprep.subr.mxu0 0.0
    %1433 = vmatpush1.msra.mxu0 0.0
    %1434 = vmatprep.subr.mxu0 0.0
    %1435 = vmatpush1.msra.mxu0 0.0
    %1436 = vmatprep.subr.mxu0 0.0
    %1437 = vmatpush1.msra.mxu0 0.0
    %1438 = vmatprep.subr.mxu0 0.0
    %1439 = vmatpush1.msra.mxu0 0.0
    %1440 = vmatprep.subr.mxu0 0.0
    %1441 = vmatpush1.msra.mxu0 0.0
    %1442 = vmatprep.subr.mxu0 0.0
    %1443 = vmatpush1.msra.mxu0 0.0
    %1444 = vmatprep.subr.mxu0 0.0
    %1445 = vmatpush1.msra.mxu0 0.0
    %1446 = vmatprep.subr.mxu0 0.0
    %1447 = vmatpush1.msra.mxu0 0.0
    %1448 = vmatprep.subr.mxu0 0.0
    %1449 = vmatpush1.msra.mxu0 0.0
    %1450 = vmatprep.subr.mxu0 0.0
    %1451 = vmatpush1.msra.mxu0 0.0
    %1452 = vmatprep.subr.mxu0 0.0
    %1453 = vmatpush1.msra.mxu0 0.0
    %1454 = vmatprep.subr.mxu0 0.0
    %1455 = vmatpush1.msra.mxu0 0.0
    %1456 = vmatprep.subr.mxu0 0.0
    %1457 = vmatpush1.msra.mxu0 0.0
    %1458 = vmatprep.subr.mxu0 0.0
    %1459 = vmatpush1.msra.mxu0 0.0
    %1460 = vmatprep.mubr.f32.mxu0 0.0
    %1461 = vmatmul.mubr.f32.gmra.mrb[0].mxu0 %v1392
    %v1462 = vpop.f32.mrb[0].mxu0
    %v1463 = vadd.f32 %v391, %v1462
    %v1464 = vpop.f32.mrb[0].mxu0
    %v1465 = vadd.f32 %v395, %v1464
    %1466 = vdwg.mxu0
    %1467 = vmatprep.subr.mxu0 0.0
    %1468 = vmatpush1.msra.mxu0 %v340
    %1469 = vmatprep.subr.mxu0 0.0
    %1470 = vmatpush1.msra.mxu0 %v343
    %1471 = vmatprep.subr.mxu0 0.0
    %1472 = vmatpush1.msra.mxu0 %v346
    %1473 = vmatprep.subr.mxu0 0.0
    %1474 = vmatpush1.msra.mxu0 %v349
    %1475 = vmatprep.subr.mxu0 0.0
    %1476 = vmatpush1.msra.mxu0 %v352
    %1477 = vmatprep.subr.mxu0 0.0
    %1478 = vmatpush1.msra.mxu0 %v355
    %1479 = vmatprep.subr.mxu0 0.0
    %1480 = vmatpush1.msra.mxu0 %v358
    %1481 = vmatprep.subr.mxu0 0.0
    %1482 = vmatpush1.msra.mxu0 %v361
    %1483 = vmatprep.subr.mxu0 0.0
    %1484 = vmatpush1.msra.mxu0 %v364
    %1485 = vmatprep.subr.mxu0 0.0
    %1486 = vmatpush1.msra.mxu0 %v367
    %1487 = vmatprep.subr.mxu0 0.0
    %1488 = vmatpush1.msra.mxu0 %v370
    %1489 = vmatprep.subr.mxu0 0.0
    %1490 = vmatpush1.msra.mxu0 %v373
    %1491 = vmatprep.subr.mxu0 0.0
    %1492 = vmatpush1.msra.mxu0 %v376
    %1493 = vmatprep.subr.mxu0 0.0
    %1494 = vmatpush1.msra.mxu0 %v379
    %1495 = vmatprep.subr.mxu0 0.0
    %1496 = vmatpush1.msra.mxu0 %v382
    %1497 = vmatprep.subr.mxu0 0.0
    %1498 = vmatpush1.msra.mxu0 %v385
    %1499 = vmatprep.subr.mxu0 0.0
    %1500 = vmatpush1.msra.mxu0 0.0
    %1501 = vmatprep.subr.mxu0 0.0
    %1502 = vmatpush1.msra.mxu0 0.0
    %1503 = vmatprep.subr.mxu0 0.0
    %1504 = vmatpush1.msra.mxu0 0.0
    %1505 = vmatprep.subr.mxu0 0.0
    %1506 = vmatpush1.msra.mxu0 0.0
    %1507 = vmatprep.subr.mxu0 0.0
    %1508 = vmatpush1.msra.mxu0 0.0
    %1509 = vmatprep.subr.mxu0 0.0
    %1510 = vmatpush1.msra.mxu0 0.0
    %1511 = vmatprep.subr.mxu0 0.0
    %1512 = vmatpush1.msra.mxu0 0.0
    %1513 = vmatprep.subr.mxu0 0.0
    %1514 = vmatpush1.msra.mxu0 0.0
    %1515 = vmatprep.subr.mxu0 0.0
    %1516 = vmatpush1.msra.mxu0 0.0
    %1517 = vmatprep.subr.mxu0 0.0
    %1518 = vmatpush1.msra.mxu0 0.0
    %1519 = vmatprep.subr.mxu0 0.0
    %1520 = vmatpush1.msra.mxu0 0.0
    %1521 = vmatprep.subr.mxu0 0.0
    %1522 = vmatpush1.msra.mxu0 0.0
    %1523 = vmatprep.subr.mxu0 0.0
    %1524 = vmatpush1.msra.mxu0 0.0
    %1525 = vmatprep.subr.mxu0 0.0
    %1526 = vmatpush1.msra.mxu0 0.0
    %1527 = vmatprep.subr.mxu0 0.0
    %1528 = vmatpush1.msra.mxu0 0.0
    %1529 = vmatprep.subr.mxu0 0.0
    %1530 = vmatpush1.msra.mxu0 0.0
    %1531 = vmatprep.mubr.f32.mxu0 0.0
    %1532 = vmatmul.mubr.f32.gmra.mrb[0].mxu0 %v1392
    %v1533 = vpop.f32.mrb[0].mxu0
    %v1534 = vadd.f32 %v399, %v1533
    %v1535 = vpop.f32.mrb[0].mxu0
    %1536 = vdwg.mxu0
    %v1537 = vadd.f32 %v1393, %v1463
    %v1538 = vxor.u32 %v1537, 2147483648
    %v1539 = vmul.f32 %v1538, 1.442695
    %v1540 = vpow.pop %v1539
    %v1541 = vadd.f32 %v1540, 1.0
    %v1542 = vrcp.pop %v1541
    %v1543 = vmul.f32 1.0, %v1542
    %v1544 = vadd.f32 %v1394, %v1465
    %v1545 = vxor.u32 %v1544, 2147483648
    %v1546 = vmul.f32 %v1545, 1.442695
    %v1547 = vpow.pop %v1546
    %v1548 = vadd.f32 %v1547, 1.0
    %v1549 = vrcp.pop %v1548
    %v1550 = vmul.f32 1.0, %v1549
    %v1551 = vmul.f32 %v1543, %v1534
    %v1552 = vadd.f32 %v1395, %v1551
    %v1553 = vtanh.pop %v1552
    %v1554 = vsub.f32 1.0, %v1550
    %v1555 = vmul.f32 %v1554, %v1553
    %v1556 = vmul.f32 %v1550, %v1392
    %v1557 = vadd.f32 %v1555, %v1556
    %v1558 = vld [vmem:[#allocation2 + $0xa8] sm:$0xff]
    %v1559 = vld [vmem:[#allocation2 + $0xb0] sm:$0xff]
    %v1560 = vld [vmem:[#allocation2 + $0xb8] sm:$0xff]
    %1561 = vmatprep.subr.mxu0 %v339
    %1562 = vmatpush1.msra.mxu0 %v338
    %1563 = vmatprep.subr.mxu0 %v342
    %1564 = vmatpush1.msra.mxu0 %v341
    %1565 = vmatprep.subr.mxu0 %v345
    %1566 = vmatpush1.msra.mxu0 %v344
    %1567 = vmatprep.subr.mxu0 %v348
    %1568 = vmatpush1.msra.mxu0 %v347
    %1569 = vmatprep.subr.mxu0 %v351
    %1570 = vmatpush1.msra.mxu0 %v350
    %1571 = vmatprep.subr.mxu0 %v354
    %1572 = vmatpush1.msra.mxu0 %v353
    %1573 = vmatprep.subr.mxu0 %v357
    %1574 = vmatpush1.msra.mxu0 %v356
    %1575 = vmatprep.subr.mxu0 %v360
    %1576 = vmatpush1.msra.mxu0 %v359
    %1577 = vmatprep.subr.mxu0 %v363
    %1578 = vmatpush1.msra.mxu0 %v362
    %1579 = vmatprep.subr.mxu0 %v366
    %1580 = vmatpush1.msra.mxu0 %v365
    %1581 = vmatprep.subr.mxu0 %v369
    %1582 = vmatpush1.msra.mxu0 %v368
    %1583 = vmatprep.subr.mxu0 %v372
    %1584 = vmatpush1.msra.mxu0 %v371
    %1585 = vmatprep.subr.mxu0 %v375
    %1586 = vmatpush1.msra.mxu0 %v374
    %1587 = vmatprep.subr.mxu0 %v378
    %1588 = vmatpush1.msra.mxu0 %v377
    %1589 = vmatprep.subr.mxu0 %v381
    %1590 = vmatpush1.msra.mxu0 %v380
    %1591 = vmatprep.subr.mxu0 %v384
    %1592 = vmatpush1.msra.mxu0 %v383
    %1593 = vmatprep.subr.mxu0 0.0
    %1594 = vmatpush1.msra.mxu0 0.0
    %1595 = vmatprep.subr.mxu0 0.0
    %1596 = vmatpush1.msra.mxu0 0.0
    %1597 = vmatprep.subr.mxu0 0.0
    %1598 = vmatpush1.msra.mxu0 0.0
    %1599 = vmatprep.subr.mxu0 0.0
    %1600 = vmatpush1.msra.mxu0 0.0
    %1601 = vmatprep.subr.mxu0 0.0
    %1602 = vmatpush1.msra.mxu0 0.0
    %1603 = vmatprep.subr.mxu0 0.0
    %1604 = vmatpush1.msra.mxu0 0.0
    %1605 = vmatprep.subr.mxu0 0.0
    %1606 = vmatpush1.msra.mxu0 0.0
    %1607 = vmatprep.subr.mxu0 0.0
    %1608 = vmatpush1.msra.mxu0 0.0
    %1609 = vmatprep.subr.mxu0 0.0
    %1610 = vmatpush1.msra.mxu0 0.0
    %1611 = vmatprep.subr.mxu0 0.0
    %1612 = vmatpush1.msra.mxu0 0.0
    %1613 = vmatprep.subr.mxu0 0.0
    %1614 = vmatpush1.msra.mxu0 0.0
    %1615 = vmatprep.subr.mxu0 0.0
    %1616 = vmatpush1.msra.mxu0 0.0
    %1617 = vmatprep.subr.mxu0 0.0
    %1618 = vmatpush1.msra.mxu0 0.0
    %1619 = vmatprep.subr.mxu0 0.0
    %1620 = vmatpush1.msra.mxu0 0.0
    %1621 = vmatprep.subr.mxu0 0.0
    %1622 = vmatpush1.msra.mxu0 0.0
    %1623 = vmatprep.subr.mxu0 0.0
    %1624 = vmatpush1.msra.mxu0 0.0
    %1625 = vmatprep.mubr.f32.mxu0 0.0
    %1626 = vmatmul.mubr.f32.gmra.mrb[0].mxu0 %v1557
    %v1627 = vpop.f32.mrb[0].mxu0
    %v1628 = vadd.f32 %v391, %v1627
    %v1629 = vpop.f32.mrb[0].mxu0
    %v1630 = vadd.f32 %v395, %v1629
    %1631 = vdwg.mxu0
    %1632 = vmatprep.subr.mxu0 0.0
    %1633 = vmatpush1.msra.mxu0 %v340
    %1634 = vmatprep.subr.mxu0 0.0
    %1635 = vmatpush1.msra.mxu0 %v343
    %1636 = vmatprep.subr.mxu0 0.0
    %1637 = vmatpush1.msra.mxu0 %v346
    %1638 = vmatprep.subr.mxu0 0.0
    %1639 = vmatpush1.msra.mxu0 %v349
    %1640 = vmatprep.subr.mxu0 0.0
    %1641 = vmatpush1.msra.mxu0 %v352
    %1642 = vmatprep.subr.mxu0 0.0
    %1643 = vmatpush1.msra.mxu0 %v355
    %1644 = vmatprep.subr.mxu0 0.0
    %1645 = vmatpush1.msra.mxu0 %v358
    %1646 = vmatprep.subr.mxu0 0.0
    %1647 = vmatpush1.msra.mxu0 %v361
    %1648 = vmatprep.subr.mxu0 0.0
    %1649 = vmatpush1.msra.mxu0 %v364
    %1650 = vmatprep.subr.mxu0 0.0
    %1651 = vmatpush1.msra.mxu0 %v367
    %1652 = vmatprep.subr.mxu0 0.0
    %1653 = vmatpush1.msra.mxu0 %v370
    %1654 = vmatprep.subr.mxu0 0.0
    %1655 = vmatpush1.msra.mxu0 %v373
    %1656 = vmatprep.subr.mxu0 0.0
    %1657 = vmatpush1.msra.mxu0 %v376
    %1658 = vmatprep.subr.mxu0 0.0
    %1659 = vmatpush1.msra.mxu0 %v379
    %1660 = vmatprep.subr.mxu0 0.0
    %1661 = vmatpush1.msra.mxu0 %v382
    %1662 = vmatprep.subr.mxu0 0.0
    %1663 = vmatpush1.msra.mxu0 %v385
    %1664 = vmatprep.subr.mxu0 0.0
    %1665 = vmatpush1.msra.mxu0 0.0
    %1666 = vmatprep.subr.mxu0 0.0
    %1667 = vmatpush1.msra.mxu0 0.0
    %1668 = vmatprep.subr.mxu0 0.0
    %1669 = vmatpush1.msra.mxu0 0.0
    %1670 = vmatprep.subr.mxu0 0.0
    %1671 = vmatpush1.msra.mxu0 0.0
    %1672 = vmatprep.subr.mxu0 0.0
    %1673 = vmatpush1.msra.mxu0 0.0
    %1674 = vmatprep.subr.mxu0 0.0
    %1675 = vmatpush1.msra.mxu0 0.0
    %1676 = vmatprep.subr.mxu0 0.0
    %1677 = vmatpush1.msra.mxu0 0.0
    %1678 = vmatprep.subr.mxu0 0.0
    %1679 = vmatpush1.msra.mxu0 0.0
    %1680 = vmatprep.subr.mxu0 0.0
    %1681 = vmatpush1.msra.mxu0 0.0
    %1682 = vmatprep.subr.mxu0 0.0
    %1683 = vmatpush1.msra.mxu0 0.0
    %1684 = vmatprep.subr.mxu0 0.0
    %1685 = vmatpush1.msra.mxu0 0.0
    %1686 = vmatprep.subr.mxu0 0.0
    %1687 = vmatpush1.msra.mxu0 0.0
    %1688 = vmatprep.subr.mxu0 0.0
    %1689 = vmatpush1.msra.mxu0 0.0
    %1690 = vmatprep.subr.mxu0 0.0
    %1691 = vmatpush1.msra.mxu0 0.0
    %1692 = vmatprep.subr.mxu0 0.0
    %1693 = vmatpush1.msra.mxu0 0.0
    %1694 = vmatprep.subr.mxu0 0.0
    %1695 = vmatpush1.msra.mxu0 0.0
    %1696 = vmatprep.mubr.f32.mxu0 0.0
    %1697 = vmatmul.mubr.f32.gmra.mrb[0].mxu0 %v1557
    %v1698 = vpop.f32.mrb[0].mxu0
    %v1699 = vadd.f32 %v399, %v1698
    %v1700 = vpop.f32.mrb[0].mxu0
    %1701 = vdwg.mxu0
    %v1702 = vadd.f32 %v1558, %v1628
    %v1703 = vxor.u32 %v1702, 2147483648
    %v1704 = vmul.f32 %v1703, 1.442695
    %v1705 = vpow.pop %v1704
    %v1706 = vadd.f32 %v1705, 1.0
    %v1707 = vrcp.pop %v1706
    %v1708 = vmul.f32 1.0, %v1707
    %v1709 = vadd.f32 %v1559, %v1630
    %v1710 = vxor.u32 %v1709, 2147483648
    %v1711 = vmul.f32 %v1710, 1.442695
    %v1712 = vpow.pop %v1711
    %v1713 = vadd.f32 %v1712, 1.0
    %v1714 = vrcp.pop %v1713
    %v1715 = vmul.f32 1.0, %v1714
    %v1716 = vmul.f32 %v1708, %v1699
    %v1717 = vadd.f32 %v1560, %v1716
    %v1718 = vtanh.pop %v1717
    %v1719 = vsub.f32 1.0, %v1715
    %v1720 = vmul.f32 %v1719, %v1718
    %v1721 = vmul.f32 %v1715, %v1557
    %v1722 = vadd.f32 %v1720, %v1721
    %v1723 = vld [vmem:[%s5] sm:$0xff]
    %v1724 = vld [vmem:[%s5 + $0x8] sm:$0xff]
    %v1725 = vld [vmem:[%s5 + $0x10] sm:$0xff]
    %v1726 = vld [vmem:[%s5 + $0x18] sm:$0xff]
    %v1727 = vld [vmem:[%s5 + $0x20] sm:$0xff]
    %v1728 = vld [vmem:[%s5 + $0x28] sm:$0xff]
    %v1729 = vld [vmem:[%s5 + $0x30] sm:$0xff]
    %v1730 = vld [vmem:[%s5 + $0x38] sm:$0xff]
    %v1731 = vld [vmem:[%s5 + $0x40] sm:$0xff]
    %v1732 = vld [vmem:[%s5 + $0x48] sm:$0xff]
    %v1733 = vld [vmem:[%s5 + $0x50] sm:$0xff]
    %v1734 = vld [vmem:[%s5 + $0x58] sm:$0xff]
    %v1735 = vld [vmem:[%s5 + $0x60] sm:$0xff]
    %v1736 = vld [vmem:[%s5 + $0x68] sm:$0xff]
    %v1737 = vld [vmem:[%s5 + $0x70] sm:$0xff]
    %v1738 = vld [vmem:[%s5 + $0x78] sm:$0xff]
    %v1739 = vld [vmem:[%s6] sm:$0x1]
    %v1741 = vlaneseq
    %v1742 = vshrl.u32 %v1741, 7
    %v1743 = vsub.s32 0, %v1742
    %v1744 = vrot.slane %v1739, %v1743
    %1746 = vmatprep.subr.mxu0 0.0
    %1747 = vmatpush1.msra.mxu0 %v1723
    %1748 = vmatprep.subr.mxu0 0.0
    %1749 = vmatpush1.msra.mxu0 %v1724
    %1750 = vmatprep.subr.mxu0 0.0
    %1751 = vmatpush1.msra.mxu0 %v1725
    %1752 = vmatprep.subr.mxu0 0.0
    %1753 = vmatpush1.msra.mxu0 %v1726
    %1754 = vmatprep.subr.mxu0 0.0
    %1755 = vmatpush1.msra.mxu0 %v1727
    %1756 = vmatprep.subr.mxu0 0.0
    %1757 = vmatpush1.msra.mxu0 %v1728
    %1758 = vmatprep.subr.mxu0 0.0
    %1759 = vmatpush1.msra.mxu0 %v1729
    %1760 = vmatprep.subr.mxu0 0.0
    %1761 = vmatpush1.msra.mxu0 %v1730
    %1762 = vmatprep.subr.mxu0 0.0
    %1763 = vmatpush1.msra.mxu0 %v1731
    %1764 = vmatprep.subr.mxu0 0.0
    %1765 = vmatpush1.msra.mxu0 %v1732
    %1766 = vmatprep.subr.mxu0 0.0
    %1767 = vmatpush1.msra.mxu0 %v1733
    %1768 = vmatprep.subr.mxu0 0.0
    %1769 = vmatpush1.msra.mxu0 %v1734
    %1770 = vmatprep.subr.mxu0 0.0
    %1771 = vmatpush1.msra.mxu0 %v1735
    %1772 = vmatprep.subr.mxu0 0.0
    %1773 = vmatpush1.msra.mxu0 %v1736
    %1774 = vmatprep.subr.mxu0 0.0
    %1775 = vmatpush1.msra.mxu0 %v1737
    %1776 = vmatprep.subr.mxu0 0.0
    %1777 = vmatpush1.msra.mxu0 %v1738
    %1778 = vmatprep.subr.mxu0 0.0
    %1779 = vmatpush1.msra.mxu0 0.0
    %1780 = vmatprep.subr.mxu0 0.0
    %1781 = vmatpush1.msra.mxu0 0.0
    %1782 = vmatprep.subr.mxu0 0.0
    %1783 = vmatpush1.msra.mxu0 0.0
    %1784 = vmatprep.subr.mxu0 0.0
    %1785 = vmatpush1.msra.mxu0 0.0
    %1786 = vmatprep.subr.mxu0 0.0
    %1787 = vmatpush1.msra.mxu0 0.0
    %1788 = vmatprep.subr.mxu0 0.0
    %1789 = vmatpush1.msra.mxu0 0.0
    %1790 = vmatprep.subr.mxu0 0.0
    %1791 = vmatpush1.msra.mxu0 0.0
    %1792 = vmatprep.subr.mxu0 0.0
    %1793 = vmatpush1.msra.mxu0 0.0
    %1794 = vmatprep.subr.mxu0 0.0
    %1795 = vmatpush1.msra.mxu0 0.0
    %1796 = vmatprep.subr.mxu0 0.0
    %1797 = vmatpush1.msra.mxu0 0.0
    %1798 = vmatprep.subr.mxu0 0.0
    %1799 = vmatpush1.msra.mxu0 0.0
    %1800 = vmatprep.subr.mxu0 0.0
    %1801 = vmatpush1.msra.mxu0 0.0
    %1802 = vmatprep.subr.mxu0 0.0
    %1803 = vmatpush1.msra.mxu0 0.0
    %1804 = vmatprep.subr.mxu0 0.0
    %1805 = vmatpush1.msra.mxu0 0.0
    %1806 = vmatprep.subr.mxu0 0.0
    %1807 = vmatpush1.msra.mxu0 0.0
    %1808 = vmatprep.subr.mxu0 0.0
    %1809 = vmatpush1.msra.mxu0 0.0
    %1810 = vmatprep.mubr.f32.mxu0 0.0
    %1811 = vmatmul.mubr.f32.gmra.mrb[0].mxu0 %v1722
    %v1812 = vpop.f32.mrb[0].mxu0
    %v1813 = vadd.f32 %v1744, %v1812
    %v1814 = vpop.f32.mrb[0].mxu0
    %1815 = vdwg.mxu0
    %vm1816 = vcmask 23552
    %1817 = vst.msk [vmem:[%s7] sm:$0xff] %vm1816, %v1813
    // Predicated region
    $region34: #{tpu_custom_call.1} parent=1 // pred_check
      _
    $region35: #{tpu_custom_call.1} parent=1 // pred_check_branch
      %1819 = sbr.rel (0) target = $region37
    $region36: #{tpu_custom_call.1} parent=1 // pred_region
      _
    $region37: #{tpu_custom_call.1} parent=1 // pred_fallthru
      _
    // Predicated region
    $region38: #{tpu_custom_call.1} parent=1 // pred_check
      _
    $region39: #{tpu_custom_call.1} parent=1 // pred_check_branch
      %1821 = sbr.rel (0) target = $region41
    $region40: #{tpu_custom_call.1} parent=1 // pred_region
      _
    $region41: #{tpu_custom_call.1} parent=1 // pred_fallthru
      _
    %1822 = vsyncpa [#allocation4], 1

</llo_original>
